<compile_context>
chip_gen: v5e
topology: v5e:2x2
jax: 0.10.0
libtpu: 0.0.40
codegen_flags: <defaults>
</compile_context>

<pallas_src>
import functools

import jax
import jax.numpy as jnp
import numpy as np
from jax import lax
from jax.experimental import pallas as pl
from jax.experimental.pallas import tpu as pltpu


def _round_up(x, m):
    return (x + m - 1) // m * m


def gru_proj_kernel(x2d_ref, len_ref, wi_ref, bi_ref, wh_ref, bhn_ref,
                    wp_ref, bp_ref, out_ref, xw_ref, *, B, H):
    """Single-layer GRU recurrence + final Linear projection (padded shapes).

    x2d_ref : (T*B, E)    embedded sequence, flattened time-major
    len_ref : (B, 1)      int32 sequence lengths (0 for padded batch rows)
    wi_ref  : (E, 3H)     fused input weights  [Wir | Wiz | Win]
    bi_ref  : (1, 3H)     fused input biases   [b_ir+b_hr | b_iz+b_hz | b_in]
    wh_ref  : (H, 3H)     fused recurrent weights [Whr | Whz | Whn]
    bhn_ref : (1, H)      b_hn (kept separate: multiplied by r)
    wp_ref  : (H, EMB), bp_ref : (1, EMB)   projection
    out_ref : (B, EMB)
    xw_ref  : (T*B, 3H)   VMEM scratch for the hoisted input projection
    """
    T = xw_ref.shape[0] // B

    # Hoisted input-side projection: one MXU matmul for every timestep at once.
    xw_ref[...] = (jnp.dot(x2d_ref[...], wi_ref[...],
                           preferred_element_type=jnp.float32) + bi_ref[...])

    # Loop-invariant (small) loads hoisted out of the recurrence.
    lens = len_ref[...]          # (B, 1) int32
    bhn = bhn_ref[...]           # (1, H)

    def step(t, h):
        row = pl.multiple_of(t * B, 8)
        xw_t = xw_ref[pl.ds(row, B), :]                              # (B, 3H)
        # Single fused recurrent matmul per step (the only h-dependent MXU op).
        hw = jnp.dot(h, wh_ref[...], preferred_element_type=jnp.float32)  # (B, 3H)
        r = jax.nn.sigmoid(xw_t[:, 0:H] + hw[:, 0:H])
        z = jax.nn.sigmoid(xw_t[:, H:2 * H] + hw[:, H:2 * H])
        n = jnp.tanh(xw_t[:, 2 * H:3 * H] + r * (hw[:, 2 * H:3 * H] + bhn))
        h_new = (1.0 - z) * n + z * h
        # PackedSequence semantics: freeze h once t >= length[b].
        m = (lens > t).astype(jnp.float32)                           # (B, 1)
        return h + m * (h_new - h)

    h0 = jnp.zeros((B, H), jnp.float32)
    h_last = lax.fori_loop(0, T, step, h0, unroll=True)

    # final_emb = proj(last_hidden.data[-1])
    out_ref[...] = (jnp.dot(h_last, wp_ref[...],
                            preferred_element_type=jnp.float32) + bp_ref[...])


def abc_meas_emb_forward(tokens, lengths, params):
    """tokens: (T, B) int32, lengths: (B,) int32  ->  (B, EMB) float32."""
    x = params["emb"][tokens]                  # embedding gather (glue), (T, B, E)
    T, B, E = x.shape
    H = params["whr"].shape[0]
    EMB = params["wp"].shape[1]

    B_pad = _round_up(B, 8)
    E_pad = _round_up(E, 128)
    H_pad = _round_up(H, 128)
    EMB_pad = _round_up(EMB, 128)

    def pad2(a, r, c):
        return jnp.pad(a, ((0, r - a.shape[0]), (0, c - a.shape[1])))

    # Lane/sublane-dense activations (zero padding is inert).
    x_p = jnp.pad(x.astype(jnp.float32),
                  ((0, 0), (0, B_pad - B), (0, E_pad - E)))
    x2d = x_p.reshape(T * B_pad, E_pad)
    lens = jnp.pad(lengths.astype(jnp.int32), (0, B_pad - B)).reshape(B_pad, 1)

    # Fused + zero-padded weights: [r | z | n] along the output (lane) axis.
    wi = jnp.concatenate([pad2(params["wir"], E_pad, H_pad),
                          pad2(params["wiz"], E_pad, H_pad),
                          pad2(params["win"], E_pad, H_pad)], axis=1)
    bi = jnp.concatenate([pad2(params["br"], 1, H_pad),
                          pad2(params["bz"], 1, H_pad),
                          pad2(params["bin"], 1, H_pad)], axis=1)
    wh = jnp.concatenate([pad2(params["whr"], H_pad, H_pad),
                          pad2(params["whz"], H_pad, H_pad),
                          pad2(params["whn"], H_pad, H_pad)], axis=1)
    bhn = pad2(params["bhn"], 1, H_pad)
    wp = pad2(params["wp"], H_pad, EMB_pad)
    bp = pad2(params["bp"], 1, EMB_pad)

    vmem = pl.BlockSpec(memory_space=pltpu.MemorySpace.VMEM)
    kernel = pl.pallas_call(
        functools.partial(gru_proj_kernel, B=B_pad, H=H_pad),
        out_shape=jax.ShapeDtypeStruct((B_pad, EMB_pad), jnp.float32),
        in_specs=[vmem] * 8,
        out_specs=vmem,
        scratch_shapes=[pltpu.VMEM((T * B_pad, 3 * H_pad), jnp.float32)],
    )
    out = kernel(x2d, lens, wi, bi, wh, bhn, wp, bp)
    return out[:B, :EMB]


def reference_forward(tokens, lengths, params):
    """Pure-JAX reference (same math as the PyTorch module with a 1-layer GRU)."""
    x = params["emb"][tokens].astype(jnp.float32)
    T, B, _ = x.shape
    H = params["whr"].shape[0]
    mask = (jnp.arange(T)[:, None] < lengths[None, :]).astype(jnp.float32)[:, :, None]

    def step(h, inp):
        x_t, m_t = inp
        r = jax.nn.sigmoid(x_t @ params["wir"] + h @ params["whr"] + params["br"])
        z = jax.nn.sigmoid(x_t @ params["wiz"] + h @ params["whz"] + params["bz"])
        n = jnp.tanh(x_t @ params["win"] + params["bin"]
                     + r * (h @ params["whn"] + params["bhn"]))
        h_new = (1.0 - z) * n + z * h
        return m_t * h_new + (1.0 - m_t) * h, None

    h0 = jnp.zeros((B, H), jnp.float32)
    h_last, _ = lax.scan(step, h0, (x, mask))
    return h_last @ params["wp"] + params["bp"]


def init_params(key, vocab, e_dim, hidden, emb_size):
    ks = jax.random.split(key, 16)
    u = lambda k, shape: jax.random.uniform(k, shape, jnp.float32, -0.1, 0.1)
    return {
        "emb": u(ks[0], (vocab, e_dim)),                 # nn.Embedding(vocab, e_dim)
        # nn.GRU(e_dim, hidden): weight_ih (3H,E) / weight_hh (3H,H), stored transposed per gate
        "wir": u(ks[1], (e_dim, hidden)), "wiz": u(ks[2], (e_dim, hidden)), "win": u(ks[3], (e_dim, hidden)),
        "whr": u(ks[4], (hidden, hidden)), "whz": u(ks[5], (hidden, hidden)), "whn": u(ks[6], (hidden, hidden)),
        "br":  u(ks[7], (1, hidden)),     # b_ir + b_hr (pre-summed)
        "bz":  u(ks[8], (1, hidden)),     # b_iz + b_hz (pre-summed)
        "bin": u(ks[9], (1, hidden)),     # b_in
        "bhn": u(ks[10], (1, hidden)),    # b_hn (kept separate: multiplied by r)
        # nn.Linear(hidden, emb_size)
        "wp":  u(ks[11], (hidden, emb_size)),
        "bp":  u(ks[12], (1, emb_size)),
    }


if __name__ == "__main__":
    T, B, V, E, H, EMB = 8, 2, 16, 32, 32, 128

    key = jax.random.PRNGKey(0)
    k_tok, k_par = jax.random.split(key)
    tokens = jax.random.randint(k_tok, (T, B), 0, V, dtype=jnp.int32)
    lengths = jnp.array([8, 5], dtype=jnp.int32)   # variable-length "packed" batch
    params = init_params(k_par, V, E, H, EMB)

    out = jax.block_until_ready(abc_meas_emb_forward(tokens, lengths, params))
    ref = jax.block_until_ready(reference_forward(tokens, lengths, params))

    assert out.shape == (B, EMB) and out.dtype == jnp.float32
    np.testing.assert_allclose(np.asarray(out), np.asarray(ref), rtol=2e-5, atol=2e-5)
    print("KERNEL_OK")
</pallas_src>

<mosaic_0001>
module attributes {stable_mosaic.version = 11 : i64} {
  func.func @gru_proj_kernel(%arg0: memref<64x128xf32, #tpu.memory_space<vmem>>, %arg1: memref<8x1xi32, #tpu.memory_space<vmem>>, %arg2: memref<128x384xf32, #tpu.memory_space<vmem>>, %arg3: memref<1x384xf32, #tpu.memory_space<vmem>>, %arg4: memref<128x384xf32, #tpu.memory_space<vmem>>, %arg5: memref<1x128xf32, #tpu.memory_space<vmem>>, %arg6: memref<128x128xf32, #tpu.memory_space<vmem>>, %arg7: memref<1x128xf32, #tpu.memory_space<vmem>>, %arg8: memref<8x128xf32, #tpu.memory_space<vmem>>, %arg9: memref<64x384xf32, #tpu.memory_space<vmem>>) attributes {dimension_semantics = [], scalar_prefetch = 0 : i64, scratch_operands = 1 : i64, tpu.core_type = #tpu.core_type<tc>} {
    %c0 = arith.constant 0 : index
    %c0_0 = arith.constant 0 : index
    %0 = vector.load %arg0[%c0, %c0_0] : memref<64x128xf32, #tpu.memory_space<vmem>>, vector<64x128xf32>
    %c0_1 = arith.constant 0 : index
    %c0_2 = arith.constant 0 : index
    %1 = vector.load %arg2[%c0_1, %c0_2] : memref<128x384xf32, #tpu.memory_space<vmem>>, vector<128x384xf32>
    %cst = arith.constant dense<0.000000e+00> : vector<64x384xf32>
    %2 = tpu.matmul %0, %1, %cst {dimension_numbers = #tpu.dot_dimension_numbers<[1], [0], [0], [1], [0, 0, 1, 1], [], []>} : vector<64x128xf32>, vector<128x384xf32>, vector<64x384xf32> -> vector<64x384xf32>
    %c0_3 = arith.constant 0 : index
    %c0_4 = arith.constant 0 : index
    %3 = vector.load %arg3[%c0_3, %c0_4] : memref<1x384xf32, #tpu.memory_space<vmem>>, vector<1x384xf32>
    %4 = vector.broadcast %3 : vector<1x384xf32> to vector<64x384xf32>
    %5 = arith.addf %2, %4 : vector<64x384xf32>
    %c0_5 = arith.constant 0 : index
    %c0_6 = arith.constant 0 : index
    %6 = vector.load %arg9[%c0_5, %c0_6] : memref<64x384xf32, #tpu.memory_space<vmem>>, vector<64x384xf32>
    tpu.vector_store %arg9[%c0_5, %c0_6], %5 {strides = array<i32>} : memref<64x384xf32, #tpu.memory_space<vmem>>, vector<64x384xf32>,
    %c0_7 = arith.constant 0 : index
    %c0_8 = arith.constant 0 : index
    %7 = vector.load %arg1[%c0_7, %c0_8] : memref<8x1xi32, #tpu.memory_space<vmem>>, vector<8x1xi32>
    %c0_9 = arith.constant 0 : index
    %c0_10 = arith.constant 0 : index
    %8 = vector.load %arg5[%c0_9, %c0_10] : memref<1x128xf32, #tpu.memory_space<vmem>>, vector<1x128xf32>
    %cst_11 = arith.constant 0.000000e+00 : f32
    %9 = vector.broadcast %cst_11 : f32 to vector<8x128xf32>
    %c0_i32 = arith.constant 0 : i32
    %c8_i32 = arith.constant 8 : i32
    %10 = arith.muli %c0_i32, %c8_i32 : i32
    %11 = tpu.assume_multiple %10, 8 : i32
    %12 = arith.index_cast %11 : i32 to index
    %c0_12 = arith.constant 0 : index
    %13 = vector.load %arg9[%12, %c0_12] : memref<64x384xf32, #tpu.memory_space<vmem>>, vector<8x384xf32>
    %c0_13 = arith.constant 0 : index
    %c0_14 = arith.constant 0 : index
    %14 = vector.load %arg4[%c0_13, %c0_14] : memref<128x384xf32, #tpu.memory_space<vmem>>, vector<128x384xf32>
    %cst_15 = arith.constant dense<0.000000e+00> : vector<8x384xf32>
    %15 = tpu.matmul %9, %14, %cst_15 {dimension_numbers = #tpu.dot_dimension_numbers<[1], [0], [0], [1], [0, 0, 1, 1], [], []>} : vector<8x128xf32>, vector<128x384xf32>, vector<8x384xf32> -> vector<8x384xf32>
    %16 = vector.extract_strided_slice %13 {offsets = [0, 0], sizes = [8, 128], strides = [1, 1]} : vector<8x384xf32> to vector<8x128xf32>
    %17 = vector.extract_strided_slice %15 {offsets = [0, 0], sizes = [8, 128], strides = [1, 1]} : vector<8x384xf32> to vector<8x128xf32>
    %18 = arith.addf %16, %17 : vector<8x128xf32>
    %19 = arith.negf %18 : vector<8x128xf32>
    %20 = math.exp %19 : vector<8x128xf32>
    %cst_16 = arith.constant 1.000000e+00 : f32
    %21 = vector.broadcast %cst_16 : f32 to vector<8x128xf32>
    %22 = arith.addf %21, %20 : vector<8x128xf32>
    %23 = arith.divf %21, %22 : vector<8x128xf32>
    %24 = vector.extract_strided_slice %13 {offsets = [0, 128], sizes = [8, 128], strides = [1, 1]} : vector<8x384xf32> to vector<8x128xf32>
    %25 = vector.extract_strided_slice %15 {offsets = [0, 128], sizes = [8, 128], strides = [1, 1]} : vector<8x384xf32> to vector<8x128xf32>
    %26 = arith.addf %24, %25 : vector<8x128xf32>
    %27 = arith.negf %26 : vector<8x128xf32>
    %28 = math.exp %27 : vector<8x128xf32>
    %cst_17 = arith.constant 1.000000e+00 : f32
    %29 = vector.broadcast %cst_17 : f32 to vector<8x128xf32>
    %30 = arith.addf %29, %28 : vector<8x128xf32>
    %31 = arith.divf %29, %30 : vector<8x128xf32>
    %32 = vector.extract_strided_slice %13 {offsets = [0, 256], sizes = [8, 128], strides = [1, 1]} : vector<8x384xf32> to vector<8x128xf32>
    %33 = vector.extract_strided_slice %15 {offsets = [0, 256], sizes = [8, 128], strides = [1, 1]} : vector<8x384xf32> to vector<8x128xf32>
    %34 = vector.broadcast %8 : vector<1x128xf32> to vector<8x128xf32>
    %35 = arith.addf %33, %34 : vector<8x128xf32>
    %36 = arith.mulf %23, %35 : vector<8x128xf32>
    %37 = arith.addf %32, %36 : vector<8x128xf32>
    %38 = math.tanh %37 : vector<8x128xf32>
    %cst_18 = arith.constant 1.000000e+00 : f32
    %39 = vector.broadcast %cst_18 : f32 to vector<8x128xf32>
    %40 = arith.subf %39, %31 : vector<8x128xf32>
    %41 = arith.mulf %40, %38 : vector<8x128xf32>
    %42 = arith.mulf %31, %9 : vector<8x128xf32>
    %43 = arith.addf %41, %42 : vector<8x128xf32>
    %44 = vector.broadcast %c0_i32 : i32 to vector<8x1xi32>
    %45 = arith.cmpi sgt, %7, %44 : vector<8x1xi32>
    %46 = arith.extui %45 : vector<8x1xi1> to vector<8x1xi32>
    %47 = arith.sitofp %46 : vector<8x1xi32> to vector<8x1xf32>
    %48 = arith.subf %43, %9 : vector<8x128xf32>
    %49 = vector.broadcast %47 : vector<8x1xf32> to vector<8x128xf32>
    %50 = arith.mulf %49, %48 : vector<8x128xf32>
    %51 = arith.addf %9, %50 : vector<8x128xf32>
    %c1_i32 = arith.constant 1 : i32
    %c8_i32_19 = arith.constant 8 : i32
    %52 = arith.muli %c1_i32, %c8_i32_19 : i32
    %53 = tpu.assume_multiple %52, 8 : i32
    %54 = arith.index_cast %53 : i32 to index
    %c0_20 = arith.constant 0 : index
    %55 = vector.load %arg9[%54, %c0_20] : memref<64x384xf32, #tpu.memory_space<vmem>>, vector<8x384xf32>
    %c0_21 = arith.constant 0 : index
    %c0_22 = arith.constant 0 : index
    %56 = vector.load %arg4[%c0_21, %c0_22] : memref<128x384xf32, #tpu.memory_space<vmem>>, vector<128x384xf32>
    %cst_23 = arith.constant dense<0.000000e+00> : vector<8x384xf32>
    %57 = tpu.matmul %51, %56, %cst_23 {dimension_numbers = #tpu.dot_dimension_numbers<[1], [0], [0], [1], [0, 0, 1, 1], [], []>} : vector<8x128xf32>, vector<128x384xf32>, vector<8x384xf32> -> vector<8x384xf32>
    %58 = vector.extract_strided_slice %55 {offsets = [0, 0], sizes = [8, 128], strides = [1, 1]} : vector<8x384xf32> to vector<8x128xf32>
    %59 = vector.extract_strided_slice %57 {offsets = [0, 0], sizes = [8, 128], strides = [1, 1]} : vector<8x384xf32> to vector<8x128xf32>
    %60 = arith.addf %58, %59 : vector<8x128xf32>
    %61 = arith.negf %60 : vector<8x128xf32>
    %62 = math.exp %61 : vector<8x128xf32>
    %cst_24 = arith.constant 1.000000e+00 : f32
    %63 = vector.broadcast %cst_24 : f32 to vector<8x128xf32>
    %64 = arith.addf %63, %62 : vector<8x128xf32>
    %65 = arith.divf %63, %64 : vector<8x128xf32>
    %66 = vector.extract_strided_slice %55 {offsets = [0, 128], sizes = [8, 128], strides = [1, 1]} : vector<8x384xf32> to vector<8x128xf32>
    %67 = vector.extract_strided_slice %57 {offsets = [0, 128], sizes = [8, 128], strides = [1, 1]} : vector<8x384xf32> to vector<8x128xf32>
    %68 = arith.addf %66, %67 : vector<8x128xf32>
    %69 = arith.negf %68 : vector<8x128xf32>
    %70 = math.exp %69 : vector<8x128xf32>
    %cst_25 = arith.constant 1.000000e+00 : f32
    %71 = vector.broadcast %cst_25 : f32 to vector<8x128xf32>
    %72 = arith.addf %71, %70 : vector<8x128xf32>
    %73 = arith.divf %71, %72 : vector<8x128xf32>
    %74 = vector.extract_strided_slice %55 {offsets = [0, 256], sizes = [8, 128], strides = [1, 1]} : vector<8x384xf32> to vector<8x128xf32>
    %75 = vector.extract_strided_slice %57 {offsets = [0, 256], sizes = [8, 128], strides = [1, 1]} : vector<8x384xf32> to vector<8x128xf32>
    %76 = vector.broadcast %8 : vector<1x128xf32> to vector<8x128xf32>
    %77 = arith.addf %75, %76 : vector<8x128xf32>
    %78 = arith.mulf %65, %77 : vector<8x128xf32>
    %79 = arith.addf %74, %78 : vector<8x128xf32>
    %80 = math.tanh %79 : vector<8x128xf32>
    %cst_26 = arith.constant 1.000000e+00 : f32
    %81 = vector.broadcast %cst_26 : f32 to vector<8x128xf32>
    %82 = arith.subf %81, %73 : vector<8x128xf32>
    %83 = arith.mulf %82, %80 : vector<8x128xf32>
    %84 = arith.mulf %73, %51 : vector<8x128xf32>
    %85 = arith.addf %83, %84 : vector<8x128xf32>
    %86 = vector.broadcast %c1_i32 : i32 to vector<8x1xi32>
    %87 = arith.cmpi sgt, %7, %86 : vector<8x1xi32>
    %88 = arith.extui %87 : vector<8x1xi1> to vector<8x1xi32>
    %89 = arith.sitofp %88 : vector<8x1xi32> to vector<8x1xf32>
    %90 = arith.subf %85, %51 : vector<8x128xf32>
    %91 = vector.broadcast %89 : vector<8x1xf32> to vector<8x128xf32>
    %92 = arith.mulf %91, %90 : vector<8x128xf32>
    %93 = arith.addf %51, %92 : vector<8x128xf32>
    %c2_i32 = arith.constant 2 : i32
    %c8_i32_27 = arith.constant 8 : i32
    %94 = arith.muli %c2_i32, %c8_i32_27 : i32
    %95 = tpu.assume_multiple %94, 8 : i32
    %96 = arith.index_cast %95 : i32 to index
    %c0_28 = arith.constant 0 : index
    %97 = vector.load %arg9[%96, %c0_28] : memref<64x384xf32, #tpu.memory_space<vmem>>, vector<8x384xf32>
    %c0_29 = arith.constant 0 : index
    %c0_30 = arith.constant 0 : index
    %98 = vector.load %arg4[%c0_29, %c0_30] : memref<128x384xf32, #tpu.memory_space<vmem>>, vector<128x384xf32>
    %cst_31 = arith.constant dense<0.000000e+00> : vector<8x384xf32>
    %99 = tpu.matmul %93, %98, %cst_31 {dimension_numbers = #tpu.dot_dimension_numbers<[1], [0], [0], [1], [0, 0, 1, 1], [], []>} : vector<8x128xf32>, vector<128x384xf32>, vector<8x384xf32> -> vector<8x384xf32>
    %100 = vector.extract_strided_slice %97 {offsets = [0, 0], sizes = [8, 128], strides = [1, 1]} : vector<8x384xf32> to vector<8x128xf32>
    %101 = vector.extract_strided_slice %99 {offsets = [0, 0], sizes = [8, 128], strides = [1, 1]} : vector<8x384xf32> to vector<8x128xf32>
    %102 = arith.addf %100, %101 : vector<8x128xf32>
    %103 = arith.negf %102 : vector<8x128xf32>
    %104 = math.exp %103 : vector<8x128xf32>
    %cst_32 = arith.constant 1.000000e+00 : f32
    %105 = vector.broadcast %cst_32 : f32 to vector<8x128xf32>
    %106 = arith.addf %105, %104 : vector<8x128xf32>
    %107 = arith.divf %105, %106 : vector<8x128xf32>
    %108 = vector.extract_strided_slice %97 {offsets = [0, 128], sizes = [8, 128], strides = [1, 1]} : vector<8x384xf32> to vector<8x128xf32>
    %109 = vector.extract_strided_slice %99 {offsets = [0, 128], sizes = [8, 128], strides = [1, 1]} : vector<8x384xf32> to vector<8x128xf32>
    %110 = arith.addf %108, %109 : vector<8x128xf32>
    %111 = arith.negf %110 : vector<8x128xf32>
    %112 = math.exp %111 : vector<8x128xf32>
    %cst_33 = arith.constant 1.000000e+00 : f32
    %113 = vector.broadcast %cst_33 : f32 to vector<8x128xf32>
    %114 = arith.addf %113, %112 : vector<8x128xf32>
    %115 = arith.divf %113, %114 : vector<8x128xf32>
    %116 = vector.extract_strided_slice %97 {offsets = [0, 256], sizes = [8, 128], strides = [1, 1]} : vector<8x384xf32> to vector<8x128xf32>
    %117 = vector.extract_strided_slice %99 {offsets = [0, 256], sizes = [8, 128], strides = [1, 1]} : vector<8x384xf32> to vector<8x128xf32>
    %118 = vector.broadcast %8 : vector<1x128xf32> to vector<8x128xf32>
    %119 = arith.addf %117, %118 : vector<8x128xf32>
    %120 = arith.mulf %107, %119 : vector<8x128xf32>
    %121 = arith.addf %116, %120 : vector<8x128xf32>
    %122 = math.tanh %121 : vector<8x128xf32>
    %cst_34 = arith.constant 1.000000e+00 : f32
    %123 = vector.broadcast %cst_34 : f32 to vector<8x128xf32>
    %124 = arith.subf %123, %115 : vector<8x128xf32>
    %125 = arith.mulf %124, %122 : vector<8x128xf32>
    %126 = arith.mulf %115, %93 : vector<8x128xf32>
    %127 = arith.addf %125, %126 : vector<8x128xf32>
    %128 = vector.broadcast %c2_i32 : i32 to vector<8x1xi32>
    %129 = arith.cmpi sgt, %7, %128 : vector<8x1xi32>
    %130 = arith.extui %129 : vector<8x1xi1> to vector<8x1xi32>
    %131 = arith.sitofp %130 : vector<8x1xi32> to vector<8x1xf32>
    %132 = arith.subf %127, %93 : vector<8x128xf32>
    %133 = vector.broadcast %131 : vector<8x1xf32> to vector<8x128xf32>
    %134 = arith.mulf %133, %132 : vector<8x128xf32>
    %135 = arith.addf %93, %134 : vector<8x128xf32>
    %c3_i32 = arith.constant 3 : i32
    %c8_i32_35 = arith.constant 8 : i32
    %136 = arith.muli %c3_i32, %c8_i32_35 : i32
    %137 = tpu.assume_multiple %136, 8 : i32
    %138 = arith.index_cast %137 : i32 to index
    %c0_36 = arith.constant 0 : index
    %139 = vector.load %arg9[%138, %c0_36] : memref<64x384xf32, #tpu.memory_space<vmem>>, vector<8x384xf32>
    %c0_37 = arith.constant 0 : index
    %c0_38 = arith.constant 0 : index
    %140 = vector.load %arg4[%c0_37, %c0_38] : memref<128x384xf32, #tpu.memory_space<vmem>>, vector<128x384xf32>
    %cst_39 = arith.constant dense<0.000000e+00> : vector<8x384xf32>
    %141 = tpu.matmul %135, %140, %cst_39 {dimension_numbers = #tpu.dot_dimension_numbers<[1], [0], [0], [1], [0, 0, 1, 1], [], []>} : vector<8x128xf32>, vector<128x384xf32>, vector<8x384xf32> -> vector<8x384xf32>
    %142 = vector.extract_strided_slice %139 {offsets = [0, 0], sizes = [8, 128], strides = [1, 1]} : vector<8x384xf32> to vector<8x128xf32>
    %143 = vector.extract_strided_slice %141 {offsets = [0, 0], sizes = [8, 128], strides = [1, 1]} : vector<8x384xf32> to vector<8x128xf32>
    %144 = arith.addf %142, %143 : vector<8x128xf32>
    %145 = arith.negf %144 : vector<8x128xf32>
    %146 = math.exp %145 : vector<8x128xf32>
    %cst_40 = arith.constant 1.000000e+00 : f32
    %147 = vector.broadcast %cst_40 : f32 to vector<8x128xf32>
    %148 = arith.addf %147, %146 : vector<8x128xf32>
    %149 = arith.divf %147, %148 : vector<8x128xf32>
    %150 = vector.extract_strided_slice %139 {offsets = [0, 128], sizes = [8, 128], strides = [1, 1]} : vector<8x384xf32> to vector<8x128xf32>
    %151 = vector.extract_strided_slice %141 {offsets = [0, 128], sizes = [8, 128], strides = [1, 1]} : vector<8x384xf32> to vector<8x128xf32>
    %152 = arith.addf %150, %151 : vector<8x128xf32>
    %153 = arith.negf %152 : vector<8x128xf32>
    %154 = math.exp %153 : vector<8x128xf32>
    %cst_41 = arith.constant 1.000000e+00 : f32
    %155 = vector.broadcast %cst_41 : f32 to vector<8x128xf32>
    %156 = arith.addf %155, %154 : vector<8x128xf32>
    %157 = arith.divf %155, %156 : vector<8x128xf32>
    %158 = vector.extract_strided_slice %139 {offsets = [0, 256], sizes = [8, 128], strides = [1, 1]} : vector<8x384xf32> to vector<8x128xf32>
    %159 = vector.extract_strided_slice %141 {offsets = [0, 256], sizes = [8, 128], strides = [1, 1]} : vector<8x384xf32> to vector<8x128xf32>
    %160 = vector.broadcast %8 : vector<1x128xf32> to vector<8x128xf32>
    %161 = arith.addf %159, %160 : vector<8x128xf32>
    %162 = arith.mulf %149, %161 : vector<8x128xf32>
    %163 = arith.addf %158, %162 : vector<8x128xf32>
    %164 = math.tanh %163 : vector<8x128xf32>
    %cst_42 = arith.constant 1.000000e+00 : f32
    %165 = vector.broadcast %cst_42 : f32 to vector<8x128xf32>
    %166 = arith.subf %165, %157 : vector<8x128xf32>
    %167 = arith.mulf %166, %164 : vector<8x128xf32>
    %168 = arith.mulf %157, %135 : vector<8x128xf32>
    %169 = arith.addf %167, %168 : vector<8x128xf32>
    %170 = vector.broadcast %c3_i32 : i32 to vector<8x1xi32>
    %171 = arith.cmpi sgt, %7, %170 : vector<8x1xi32>
    %172 = arith.extui %171 : vector<8x1xi1> to vector<8x1xi32>
    %173 = arith.sitofp %172 : vector<8x1xi32> to vector<8x1xf32>
    %174 = arith.subf %169, %135 : vector<8x128xf32>
    %175 = vector.broadcast %173 : vector<8x1xf32> to vector<8x128xf32>
    %176 = arith.mulf %175, %174 : vector<8x128xf32>
    %177 = arith.addf %135, %176 : vector<8x128xf32>
    %c4_i32 = arith.constant 4 : i32
    %c8_i32_43 = arith.constant 8 : i32
    %178 = arith.muli %c4_i32, %c8_i32_43 : i32
    %179 = tpu.assume_multiple %178, 8 : i32
    %180 = arith.index_cast %179 : i32 to index
    %c0_44 = arith.constant 0 : index
    %181 = vector.load %arg9[%180, %c0_44] : memref<64x384xf32, #tpu.memory_space<vmem>>, vector<8x384xf32>
    %c0_45 = arith.constant 0 : index
    %c0_46 = arith.constant 0 : index
    %182 = vector.load %arg4[%c0_45, %c0_46] : memref<128x384xf32, #tpu.memory_space<vmem>>, vector<128x384xf32>
    %cst_47 = arith.constant dense<0.000000e+00> : vector<8x384xf32>
    %183 = tpu.matmul %177, %182, %cst_47 {dimension_numbers = #tpu.dot_dimension_numbers<[1], [0], [0], [1], [0, 0, 1, 1], [], []>} : vector<8x128xf32>, vector<128x384xf32>, vector<8x384xf32> -> vector<8x384xf32>
    %184 = vector.extract_strided_slice %181 {offsets = [0, 0], sizes = [8, 128], strides = [1, 1]} : vector<8x384xf32> to vector<8x128xf32>
    %185 = vector.extract_strided_slice %183 {offsets = [0, 0], sizes = [8, 128], strides = [1, 1]} : vector<8x384xf32> to vector<8x128xf32>
    %186 = arith.addf %184, %185 : vector<8x128xf32>
    %187 = arith.negf %186 : vector<8x128xf32>
    %188 = math.exp %187 : vector<8x128xf32>
    %cst_48 = arith.constant 1.000000e+00 : f32
    %189 = vector.broadcast %cst_48 : f32 to vector<8x128xf32>
    %190 = arith.addf %189, %188 : vector<8x128xf32>
    %191 = arith.divf %189, %190 : vector<8x128xf32>
    %192 = vector.extract_strided_slice %181 {offsets = [0, 128], sizes = [8, 128], strides = [1, 1]} : vector<8x384xf32> to vector<8x128xf32>
    %193 = vector.extract_strided_slice %183 {offsets = [0, 128], sizes = [8, 128], strides = [1, 1]} : vector<8x384xf32> to vector<8x128xf32>
    %194 = arith.addf %192, %193 : vector<8x128xf32>
    %195 = arith.negf %194 : vector<8x128xf32>
    %196 = math.exp %195 : vector<8x128xf32>
    %cst_49 = arith.constant 1.000000e+00 : f32
    %197 = vector.broadcast %cst_49 : f32 to vector<8x128xf32>
    %198 = arith.addf %197, %196 : vector<8x128xf32>
    %199 = arith.divf %197, %198 : vector<8x128xf32>
    %200 = vector.extract_strided_slice %181 {offsets = [0, 256], sizes = [8, 128], strides = [1, 1]} : vector<8x384xf32> to vector<8x128xf32>
    %201 = vector.extract_strided_slice %183 {offsets = [0, 256], sizes = [8, 128], strides = [1, 1]} : vector<8x384xf32> to vector<8x128xf32>
    %202 = vector.broadcast %8 : vector<1x128xf32> to vector<8x128xf32>
    %203 = arith.addf %201, %202 : vector<8x128xf32>
    %204 = arith.mulf %191, %203 : vector<8x128xf32>
    %205 = arith.addf %200, %204 : vector<8x128xf32>
    %206 = math.tanh %205 : vector<8x128xf32>
    %cst_50 = arith.constant 1.000000e+00 : f32
    %207 = vector.broadcast %cst_50 : f32 to vector<8x128xf32>
    %208 = arith.subf %207, %199 : vector<8x128xf32>
    %209 = arith.mulf %208, %206 : vector<8x128xf32>
    %210 = arith.mulf %199, %177 : vector<8x128xf32>
    %211 = arith.addf %209, %210 : vector<8x128xf32>
    %212 = vector.broadcast %c4_i32 : i32 to vector<8x1xi32>
    %213 = arith.cmpi sgt, %7, %212 : vector<8x1xi32>
    %214 = arith.extui %213 : vector<8x1xi1> to vector<8x1xi32>
    %215 = arith.sitofp %214 : vector<8x1xi32> to vector<8x1xf32>
    %216 = arith.subf %211, %177 : vector<8x128xf32>
    %217 = vector.broadcast %215 : vector<8x1xf32> to vector<8x128xf32>
    %218 = arith.mulf %217, %216 : vector<8x128xf32>
    %219 = arith.addf %177, %218 : vector<8x128xf32>
    %c5_i32 = arith.constant 5 : i32
    %c8_i32_51 = arith.constant 8 : i32
    %220 = arith.muli %c5_i32, %c8_i32_51 : i32
    %221 = tpu.assume_multiple %220, 8 : i32
    %222 = arith.index_cast %221 : i32 to index
    %c0_52 = arith.constant 0 : index
    %223 = vector.load %arg9[%222, %c0_52] : memref<64x384xf32, #tpu.memory_space<vmem>>, vector<8x384xf32>
    %c0_53 = arith.constant 0 : index
    %c0_54 = arith.constant 0 : index
    %224 = vector.load %arg4[%c0_53, %c0_54] : memref<128x384xf32, #tpu.memory_space<vmem>>, vector<128x384xf32>
    %cst_55 = arith.constant dense<0.000000e+00> : vector<8x384xf32>
    %225 = tpu.matmul %219, %224, %cst_55 {dimension_numbers = #tpu.dot_dimension_numbers<[1], [0], [0], [1], [0, 0, 1, 1], [], []>} : vector<8x128xf32>, vector<128x384xf32>, vector<8x384xf32> -> vector<8x384xf32>
    %226 = vector.extract_strided_slice %223 {offsets = [0, 0], sizes = [8, 128], strides = [1, 1]} : vector<8x384xf32> to vector<8x128xf32>
    %227 = vector.extract_strided_slice %225 {offsets = [0, 0], sizes = [8, 128], strides = [1, 1]} : vector<8x384xf32> to vector<8x128xf32>
    %228 = arith.addf %226, %227 : vector<8x128xf32>
    %229 = arith.negf %228 : vector<8x128xf32>
    %230 = math.exp %229 : vector<8x128xf32>
    %cst_56 = arith.constant 1.000000e+00 : f32
    %231 = vector.broadcast %cst_56 : f32 to vector<8x128xf32>
    %232 = arith.addf %231, %230 : vector<8x128xf32>
    %233 = arith.divf %231, %232 : vector<8x128xf32>
    %234 = vector.extract_strided_slice %223 {offsets = [0, 128], sizes = [8, 128], strides = [1, 1]} : vector<8x384xf32> to vector<8x128xf32>
    %235 = vector.extract_strided_slice %225 {offsets = [0, 128], sizes = [8, 128], strides = [1, 1]} : vector<8x384xf32> to vector<8x128xf32>
    %236 = arith.addf %234, %235 : vector<8x128xf32>
    %237 = arith.negf %236 : vector<8x128xf32>
    %238 = math.exp %237 : vector<8x128xf32>
    %cst_57 = arith.constant 1.000000e+00 : f32
    %239 = vector.broadcast %cst_57 : f32 to vector<8x128xf32>
    %240 = arith.addf %239, %238 : vector<8x128xf32>
    %241 = arith.divf %239, %240 : vector<8x128xf32>
    %242 = vector.extract_strided_slice %223 {offsets = [0, 256], sizes = [8, 128], strides = [1, 1]} : vector<8x384xf32> to vector<8x128xf32>
    %243 = vector.extract_strided_slice %225 {offsets = [0, 256], sizes = [8, 128], strides = [1, 1]} : vector<8x384xf32> to vector<8x128xf32>
    %244 = vector.broadcast %8 : vector<1x128xf32> to vector<8x128xf32>
    %245 = arith.addf %243, %244 : vector<8x128xf32>
    %246 = arith.mulf %233, %245 : vector<8x128xf32>
    %247 = arith.addf %242, %246 : vector<8x128xf32>
    %248 = math.tanh %247 : vector<8x128xf32>
    %cst_58 = arith.constant 1.000000e+00 : f32
    %249 = vector.broadcast %cst_58 : f32 to vector<8x128xf32>
    %250 = arith.subf %249, %241 : vector<8x128xf32>
    %251 = arith.mulf %250, %248 : vector<8x128xf32>
    %252 = arith.mulf %241, %219 : vector<8x128xf32>
    %253 = arith.addf %251, %252 : vector<8x128xf32>
    %254 = vector.broadcast %c5_i32 : i32 to vector<8x1xi32>
    %255 = arith.cmpi sgt, %7, %254 : vector<8x1xi32>
    %256 = arith.extui %255 : vector<8x1xi1> to vector<8x1xi32>
    %257 = arith.sitofp %256 : vector<8x1xi32> to vector<8x1xf32>
    %258 = arith.subf %253, %219 : vector<8x128xf32>
    %259 = vector.broadcast %257 : vector<8x1xf32> to vector<8x128xf32>
    %260 = arith.mulf %259, %258 : vector<8x128xf32>
    %261 = arith.addf %219, %260 : vector<8x128xf32>
    %c6_i32 = arith.constant 6 : i32
    %c8_i32_59 = arith.constant 8 : i32
    %262 = arith.muli %c6_i32, %c8_i32_59 : i32
    %263 = tpu.assume_multiple %262, 8 : i32
    %264 = arith.index_cast %263 : i32 to index
    %c0_60 = arith.constant 0 : index
    %265 = vector.load %arg9[%264, %c0_60] : memref<64x384xf32, #tpu.memory_space<vmem>>, vector<8x384xf32>
    %c0_61 = arith.constant 0 : index
    %c0_62 = arith.constant 0 : index
    %266 = vector.load %arg4[%c0_61, %c0_62] : memref<128x384xf32, #tpu.memory_space<vmem>>, vector<128x384xf32>
    %cst_63 = arith.constant dense<0.000000e+00> : vector<8x384xf32>
    %267 = tpu.matmul %261, %266, %cst_63 {dimension_numbers = #tpu.dot_dimension_numbers<[1], [0], [0], [1], [0, 0, 1, 1], [], []>} : vector<8x128xf32>, vector<128x384xf32>, vector<8x384xf32> -> vector<8x384xf32>
    %268 = vector.extract_strided_slice %265 {offsets = [0, 0], sizes = [8, 128], strides = [1, 1]} : vector<8x384xf32> to vector<8x128xf32>
    %269 = vector.extract_strided_slice %267 {offsets = [0, 0], sizes = [8, 128], strides = [1, 1]} : vector<8x384xf32> to vector<8x128xf32>
    %270 = arith.addf %268, %269 : vector<8x128xf32>
    %271 = arith.negf %270 : vector<8x128xf32>
    %272 = math.exp %271 : vector<8x128xf32>
    %cst_64 = arith.constant 1.000000e+00 : f32
    %273 = vector.broadcast %cst_64 : f32 to vector<8x128xf32>
    %274 = arith.addf %273, %272 : vector<8x128xf32>
    %275 = arith.divf %273, %274 : vector<8x128xf32>
    %276 = vector.extract_strided_slice %265 {offsets = [0, 128], sizes = [8, 128], strides = [1, 1]} : vector<8x384xf32> to vector<8x128xf32>
    %277 = vector.extract_strided_slice %267 {offsets = [0, 128], sizes = [8, 128], strides = [1, 1]} : vector<8x384xf32> to vector<8x128xf32>
    %278 = arith.addf %276, %277 : vector<8x128xf32>
    %279 = arith.negf %278 : vector<8x128xf32>
    %280 = math.exp %279 : vector<8x128xf32>
    %cst_65 = arith.constant 1.000000e+00 : f32
    %281 = vector.broadcast %cst_65 : f32 to vector<8x128xf32>
    %282 = arith.addf %281, %280 : vector<8x128xf32>
    %283 = arith.divf %281, %282 : vector<8x128xf32>
    %284 = vector.extract_strided_slice %265 {offsets = [0, 256], sizes = [8, 128], strides = [1, 1]} : vector<8x384xf32> to vector<8x128xf32>
    %285 = vector.extract_strided_slice %267 {offsets = [0, 256], sizes = [8, 128], strides = [1, 1]} : vector<8x384xf32> to vector<8x128xf32>
    %286 = vector.broadcast %8 : vector<1x128xf32> to vector<8x128xf32>
    %287 = arith.addf %285, %286 : vector<8x128xf32>
    %288 = arith.mulf %275, %287 : vector<8x128xf32>
    %289 = arith.addf %284, %288 : vector<8x128xf32>
    %290 = math.tanh %289 : vector<8x128xf32>
    %cst_66 = arith.constant 1.000000e+00 : f32
    %291 = vector.broadcast %cst_66 : f32 to vector<8x128xf32>
    %292 = arith.subf %291, %283 : vector<8x128xf32>
    %293 = arith.mulf %292, %290 : vector<8x128xf32>
    %294 = arith.mulf %283, %261 : vector<8x128xf32>
    %295 = arith.addf %293, %294 : vector<8x128xf32>
    %296 = vector.broadcast %c6_i32 : i32 to vector<8x1xi32>
    %297 = arith.cmpi sgt, %7, %296 : vector<8x1xi32>
    %298 = arith.extui %297 : vector<8x1xi1> to vector<8x1xi32>
    %299 = arith.sitofp %298 : vector<8x1xi32> to vector<8x1xf32>
    %300 = arith.subf %295, %261 : vector<8x128xf32>
    %301 = vector.broadcast %299 : vector<8x1xf32> to vector<8x128xf32>
    %302 = arith.mulf %301, %300 : vector<8x128xf32>
    %303 = arith.addf %261, %302 : vector<8x128xf32>
    %c7_i32 = arith.constant 7 : i32
    %c8_i32_67 = arith.constant 8 : i32
    %304 = arith.muli %c7_i32, %c8_i32_67 : i32
    %305 = tpu.assume_multiple %304, 8 : i32
    %306 = arith.index_cast %305 : i32 to index
    %c0_68 = arith.constant 0 : index
    %307 = vector.load %arg9[%306, %c0_68] : memref<64x384xf32, #tpu.memory_space<vmem>>, vector<8x384xf32>
    %c0_69 = arith.constant 0 : index
    %c0_70 = arith.constant 0 : index
    %308 = vector.load %arg4[%c0_69, %c0_70] : memref<128x384xf32, #tpu.memory_space<vmem>>, vector<128x384xf32>
    %cst_71 = arith.constant dense<0.000000e+00> : vector<8x384xf32>
    %309 = tpu.matmul %303, %308, %cst_71 {dimension_numbers = #tpu.dot_dimension_numbers<[1], [0], [0], [1], [0, 0, 1, 1], [], []>} : vector<8x128xf32>, vector<128x384xf32>, vector<8x384xf32> -> vector<8x384xf32>
    %310 = vector.extract_strided_slice %307 {offsets = [0, 0], sizes = [8, 128], strides = [1, 1]} : vector<8x384xf32> to vector<8x128xf32>
    %311 = vector.extract_strided_slice %309 {offsets = [0, 0], sizes = [8, 128], strides = [1, 1]} : vector<8x384xf32> to vector<8x128xf32>
    %312 = arith.addf %310, %311 : vector<8x128xf32>
    %313 = arith.negf %312 : vector<8x128xf32>
    %314 = math.exp %313 : vector<8x128xf32>
    %cst_72 = arith.constant 1.000000e+00 : f32
    %315 = vector.broadcast %cst_72 : f32 to vector<8x128xf32>
    %316 = arith.addf %315, %314 : vector<8x128xf32>
    %317 = arith.divf %315, %316 : vector<8x128xf32>
    %318 = vector.extract_strided_slice %307 {offsets = [0, 128], sizes = [8, 128], strides = [1, 1]} : vector<8x384xf32> to vector<8x128xf32>
    %319 = vector.extract_strided_slice %309 {offsets = [0, 128], sizes = [8, 128], strides = [1, 1]} : vector<8x384xf32> to vector<8x128xf32>
    %320 = arith.addf %318, %319 : vector<8x128xf32>
    %321 = arith.negf %320 : vector<8x128xf32>
    %322 = math.exp %321 : vector<8x128xf32>
    %cst_73 = arith.constant 1.000000e+00 : f32
    %323 = vector.broadcast %cst_73 : f32 to vector<8x128xf32>
    %324 = arith.addf %323, %322 : vector<8x128xf32>
    %325 = arith.divf %323, %324 : vector<8x128xf32>
    %326 = vector.extract_strided_slice %307 {offsets = [0, 256], sizes = [8, 128], strides = [1, 1]} : vector<8x384xf32> to vector<8x128xf32>
    %327 = vector.extract_strided_slice %309 {offsets = [0, 256], sizes = [8, 128], strides = [1, 1]} : vector<8x384xf32> to vector<8x128xf32>
    %328 = vector.broadcast %8 : vector<1x128xf32> to vector<8x128xf32>
    %329 = arith.addf %327, %328 : vector<8x128xf32>
    %330 = arith.mulf %317, %329 : vector<8x128xf32>
    %331 = arith.addf %326, %330 : vector<8x128xf32>
    %332 = math.tanh %331 : vector<8x128xf32>
    %cst_74 = arith.constant 1.000000e+00 : f32
    %333 = vector.broadcast %cst_74 : f32 to vector<8x128xf32>
    %334 = arith.subf %333, %325 : vector<8x128xf32>
    %335 = arith.mulf %334, %332 : vector<8x128xf32>
    %336 = arith.mulf %325, %303 : vector<8x128xf32>
    %337 = arith.addf %335, %336 : vector<8x128xf32>
    %338 = vector.broadcast %c7_i32 : i32 to vector<8x1xi32>
    %339 = arith.cmpi sgt, %7, %338 : vector<8x1xi32>
    %340 = arith.extui %339 : vector<8x1xi1> to vector<8x1xi32>
    %341 = arith.sitofp %340 : vector<8x1xi32> to vector<8x1xf32>
    %342 = arith.subf %337, %303 : vector<8x128xf32>
    %343 = vector.broadcast %341 : vector<8x1xf32> to vector<8x128xf32>
    %344 = arith.mulf %343, %342 : vector<8x128xf32>
    %345 = arith.addf %303, %344 : vector<8x128xf32>
    %c8_i32_75 = arith.constant 8 : i32
    %c0_76 = arith.constant 0 : index
    %c0_77 = arith.constant 0 : index
    %346 = vector.load %arg6[%c0_76, %c0_77] : memref<128x128xf32, #tpu.memory_space<vmem>>, vector<128x128xf32>
    %cst_78 = arith.constant dense<0.000000e+00> : vector<8x128xf32>
    %347 = tpu.matmul %345, %346, %cst_78 {dimension_numbers = #tpu.dot_dimension_numbers<[1], [0], [0], [1], [0, 0, 1, 1], [], []>} : vector<8x128xf32>, vector<128x128xf32>, vector<8x128xf32> -> vector<8x128xf32>
    %c0_79 = arith.constant 0 : index
    %c0_80 = arith.constant 0 : index
    %348 = vector.load %arg7[%c0_79, %c0_80] : memref<1x128xf32, #tpu.memory_space<vmem>>, vector<1x128xf32>
    %349 = vector.broadcast %348 : vector<1x128xf32> to vector<8x128xf32>
    %350 = arith.addf %347, %349 : vector<8x128xf32>
    %c0_81 = arith.constant 0 : index
    %c0_82 = arith.constant 0 : index
    %351 = vector.load %arg8[%c0_81, %c0_82] : memref<8x128xf32, #tpu.memory_space<vmem>>, vector<8x128xf32>
    tpu.vector_store %arg8[%c0_81, %c0_82], %350 {strides = array<i32>} : memref<8x128xf32, #tpu.memory_space<vmem>>, vector<8x128xf32>,
    return
  }
}

</mosaic_0001>

<llo_original>
// kernel: tpu_custom_call.1
$region0: #{tpu_custom_call.1}
  #allocation0 [shape = 'u32[]', space=smem, size = 0x4, offset = 0x4, fixed_abs, tag = 'smem constant byte address 0x4 - core index']
  #allocation1 [shape = 'u32[72,128]{1,0:T(1,128)}', space=vmem, size = 0x9000, scoped, tag = 'internal scratch']
  #allocation2 [shape = 'f32[64,384]{1,0:T(8,128)}', space=vmem, size = 0x18000, scoped, tag = 'scratch operand']
  %s0 = inlined_call_operand.hbm [shape: f32[64,128], index: 0, kind: input, shape index: {}]
  %s1 = inlined_call_operand.vmem [shape: s32[8,1], index: 1, kind: input, shape index: {}]
  %s2 = inlined_call_operand.hbm [shape: f32[128,384], index: 2, kind: input, shape index: {}]
  %s3 = inlined_call_operand.vmem [shape: f32[1,384], index: 3, kind: input, shape index: {}]
  %s4 = inlined_call_operand.hbm [shape: f32[128,384], index: 4, kind: input, shape index: {}]
  %s5 = inlined_call_operand.vmem [shape: f32[1,128], index: 5, kind: input, shape index: {}]
  %s6 = inlined_call_operand.hbm [shape: f32[128,128], index: 6, kind: input, shape index: {}]
  %s7 = inlined_call_operand.vmem [shape: f32[1,128], index: 7, kind: input, shape index: {}]
  %s8 = inlined_call_operand.hbm [shape: f32[8,128], index: 8, kind: output, shape index: {}]
  %s9 = sld [smem:[#allocation0]]
  $region58: #{tpu_custom_call.1} parent=0
    _
  %s11 = ssub.s32 1, %s9
  %s12 = scalar_select 0, %s11, %s9
  $region1: #{tpu_custom_call.1} parent=0
    #allocation3 [shape = 'u8[32768]{0}', space=vmem, size = 0x8000, scoped, tag = 'input window, operand 0, single buffered']
    #allocation4 [shape = 's32[1]{0}', space=sflag, size = 0x4, scoped, tag = 'scoped memory for tpu_custom_call.1']
    #allocation5 [shape = 's32[1]{0}', space=sflag, size = 0x4, scoped, tag = 'scoped memory for tpu_custom_call.1']
    #allocation6 [shape = 'u8[196608]{0}', space=vmem, size = 0x30000, scoped, tag = 'input window, operand 2, single buffered']
    #allocation7 [shape = 's32[1]{0}', space=sflag, size = 0x4, scoped, tag = 'scoped memory for tpu_custom_call.1']
    #allocation8 [shape = 'u8[196608]{0}', space=vmem, size = 0x30000, scoped, tag = 'input window, operand 4, single buffered']
    #allocation9 [shape = 'u8[65536]{0}', space=vmem, size = 0x10000, scoped, tag = 'input window, operand 6, single buffered']
    #allocation10 [shape = 's32[1]{0}', space=sflag, size = 0x4, scoped, tag = 'scoped memory for tpu_custom_call.1']
    #allocation11 [shape = 'u8[4096]{0}', space=vmem, size = 0x1000, scoped, tag = 'output window, operand 0, single buffered']
    %13 = vsyncpa [#allocation4], 0
    %14 = vsyncpa [#allocation7], 0
    %15 = vsyncpa [#allocation10], 0
    %16 = vsyncpa [#allocation5], 0
    // Predicated region
    $region2: #{tpu_custom_call.1} parent=1 // pred_check
      _
    $region3: #{tpu_custom_call.1} parent=1 // pred_check_branch
      %18 = sbr.rel (0) target = $region5
    $region4: #{tpu_custom_call.1} parent=1 // pred_region
      %20 = vsyncadd [#allocation4], 0
      %s21 = sshll.u32 %s0, 4
      %s22 = int_to_ptr.hbm [resolvable:$true] %s21
      %s23 = sshll.u32 [#allocation3], 4
      %s24 = int_to_ptr.vmem [resolvable:$true] %s23
      %29 = dma.hbm_to_vmem [thread:$0]  %s22, 1024, %s24, [#allocation4], 128, 128, 8
    $region5: #{tpu_custom_call.1} parent=1 // pred_fallthru
      _
    // Predicated region
    $region6: #{tpu_custom_call.1} parent=1 // pred_check
      _
    $region7: #{tpu_custom_call.1} parent=1 // pred_check_branch
      %31 = sbr.rel (0) target = $region9
    $region8: #{tpu_custom_call.1} parent=1 // pred_region
      _
    $region9: #{tpu_custom_call.1} parent=1 // pred_fallthru
      _
    // Predicated region
    $region10: #{tpu_custom_call.1} parent=1 // pred_check
      _
    $region11: #{tpu_custom_call.1} parent=1 // pred_check_branch
      %33 = sbr.rel (0) target = $region13
    $region12: #{tpu_custom_call.1} parent=1 // pred_region
      %35 = vsyncadd [#allocation7], 0
      %s36 = sshll.u32 %s2, 4
      %s37 = int_to_ptr.hbm [resolvable:$true] %s36
      %s38 = sshll.u32 [#allocation6], 4
      %s39 = int_to_ptr.vmem [resolvable:$true] %s38
      %44 = dma.hbm_to_vmem [thread:$0]  %s37, 6144, %s39, [#allocation7], 384, 384, 24
    $region13: #{tpu_custom_call.1} parent=1 // pred_fallthru
      _
    // Predicated region
    $region14: #{tpu_custom_call.1} parent=1 // pred_check
      _
    $region15: #{tpu_custom_call.1} parent=1 // pred_check_branch
      %46 = sbr.rel (0) target = $region17
    $region16: #{tpu_custom_call.1} parent=1 // pred_region
      _
    $region17: #{tpu_custom_call.1} parent=1 // pred_fallthru
      _
    // Predicated region
    $region18: #{tpu_custom_call.1} parent=1 // pred_check
      _
    $region19: #{tpu_custom_call.1} parent=1 // pred_check_branch
      %48 = sbr.rel (0) target = $region21
    $region20: #{tpu_custom_call.1} parent=1 // pred_region
      %50 = vsyncadd [#allocation7], 0
      %s51 = sshll.u32 %s4, 4
      %s52 = int_to_ptr.hbm [resolvable:$true] %s51
      %s53 = sshll.u32 [#allocation8], 4
      %s54 = int_to_ptr.vmem [resolvable:$true] %s53
      %59 = dma.hbm_to_vmem [thread:$0]  %s52, 6144, %s54, [#allocation7], 384, 384, 24
    $region21: #{tpu_custom_call.1} parent=1 // pred_fallthru
      _
    // Predicated region
    $region22: #{tpu_custom_call.1} parent=1 // pred_check
      _
    $region23: #{tpu_custom_call.1} parent=1 // pred_check_branch
      %61 = sbr.rel (0) target = $region25
    $region24: #{tpu_custom_call.1} parent=1 // pred_region
      _
    $region25: #{tpu_custom_call.1} parent=1 // pred_fallthru
      _
    // Predicated region
    $region26: #{tpu_custom_call.1} parent=1 // pred_check
      _
    $region27: #{tpu_custom_call.1} parent=1 // pred_check_branch
      %63 = sbr.rel (0) target = $region29
    $region28: #{tpu_custom_call.1} parent=1 // pred_region
      %65 = vsyncadd [#allocation10], 0
      %s66 = sshll.u32 %s6, 4
      %s67 = int_to_ptr.hbm [resolvable:$true] %s66
      %s68 = sshll.u32 [#allocation9], 4
      %s69 = int_to_ptr.vmem [resolvable:$true] %s68
      %74 = dma.hbm_to_vmem [thread:$0]  %s67, 2048, %s69, [#allocation10], 128, 128, 8
    $region29: #{tpu_custom_call.1} parent=1 // pred_fallthru
      _
    // Predicated region
    $region30: #{tpu_custom_call.1} parent=1 // pred_check
      _
    $region31: #{tpu_custom_call.1} parent=1 // pred_check_branch
      %76 = sbr.rel (0) target = $region33
    $region32: #{tpu_custom_call.1} parent=1 // pred_region
      _
    $region33: #{tpu_custom_call.1} parent=1 // pred_fallthru
      _
    // Predicated region
    $region34: #{tpu_custom_call.1} parent=1 // pred_check
      _
    $region35: #{tpu_custom_call.1} parent=1 // pred_check_branch
      %78 = sbr.rel (0) target = $region37
    $region36: #{tpu_custom_call.1} parent=1 // pred_region
      %80 = dma.done [#allocation4], 1024
    $region37: #{tpu_custom_call.1} parent=1 // pred_fallthru
      _
    // Predicated region
    $region38: #{tpu_custom_call.1} parent=1 // pred_check
      _
    $region39: #{tpu_custom_call.1} parent=1 // pred_check_branch
      %82 = sbr.rel (0) target = $region41
    $region40: #{tpu_custom_call.1} parent=1 // pred_region
      %84 = dma.done [#allocation7], 6144
    $region41: #{tpu_custom_call.1} parent=1 // pred_fallthru
      _
    // Predicated region
    $region42: #{tpu_custom_call.1} parent=1 // pred_check
      _
    $region43: #{tpu_custom_call.1} parent=1 // pred_check_branch
      %86 = sbr.rel (0) target = $region45
    $region44: #{tpu_custom_call.1} parent=1 // pred_region
      %88 = dma.done [#allocation7], 6144
    $region45: #{tpu_custom_call.1} parent=1 // pred_fallthru
      _
    // Predicated region
    $region46: #{tpu_custom_call.1} parent=1 // pred_check
      _
    $region47: #{tpu_custom_call.1} parent=1 // pred_check_branch
      %90 = sbr.rel (0) target = $region49
    $region48: #{tpu_custom_call.1} parent=1 // pred_region
      %92 = dma.done [#allocation10], 2048
    $region49: #{tpu_custom_call.1} parent=1 // pred_fallthru
      _
    %v93 = vld [vmem:[#allocation3] sm:$0xff]
    %v94 = vld [vmem:[#allocation3 + $0x8] sm:$0xff]
    %v95 = vld [vmem:[#allocation3 + $0x10] sm:$0xff]
    %v96 = vld [vmem:[#allocation3 + $0x18] sm:$0xff]
    %v97 = vld [vmem:[#allocation3 + $0x20] sm:$0xff]
    %v98 = vld [vmem:[#allocation3 + $0x28] sm:$0xff]
    %v99 = vld [vmem:[#allocation3 + $0x30] sm:$0xff]
    %v100 = vld [vmem:[#allocation3 + $0x38] sm:$0xff]
    %v101 = vld [vmem:[#allocation6] sm:$0xff]
    %v102 = vld [vmem:[#allocation6 + $0x8] sm:$0xff]
    %v103 = vld [vmem:[#allocation6 + $0x10] sm:$0xff]
    %v104 = vld [vmem:[#allocation6 + $0x18] sm:$0xff]
    %v105 = vld [vmem:[#allocation6 + $0x20] sm:$0xff]
    %v106 = vld [vmem:[#allocation6 + $0x28] sm:$0xff]
    %v107 = vld [vmem:[#allocation6 + $0x30] sm:$0xff]
    %v108 = vld [vmem:[#allocation6 + $0x38] sm:$0xff]
    %v109 = vld [vmem:[#allocation6 + $0x40] sm:$0xff]
    %v110 = vld [vmem:[#allocation6 + $0x48] sm:$0xff]
    %v111 = vld [vmem:[#allocation6 + $0x50] sm:$0xff]
    %v112 = vld [vmem:[#allocation6 + $0x58] sm:$0xff]
    %v113 = vld [vmem:[#allocation6 + $0x60] sm:$0xff]
    %v114 = vld [vmem:[#allocation6 + $0x68] sm:$0xff]
    %v115 = vld [vmem:[#allocation6 + $0x70] sm:$0xff]
    %v116 = vld [vmem:[#allocation6 + $0x78] sm:$0xff]
    %v117 = vld [vmem:[#allocation6 + $0x80] sm:$0xff]
    %v118 = vld [vmem:[#allocation6 + $0x88] sm:$0xff]
    %v119 = vld [vmem:[#allocation6 + $0x90] sm:$0xff]
    %v120 = vld [vmem:[#allocation6 + $0x98] sm:$0xff]
    %v121 = vld [vmem:[#allocation6 + $0xa0] sm:$0xff]
    %v122 = vld [vmem:[#allocation6 + $0xa8] sm:$0xff]
    %v123 = vld [vmem:[#allocation6 + $0xb0] sm:$0xff]
    %v124 = vld [vmem:[#allocation6 + $0xb8] sm:$0xff]
    %v125 = vld [vmem:[#allocation6 + $0xc0] sm:$0xff]
    %v126 = vld [vmem:[#allocation6 + $0xc8] sm:$0xff]
    %v127 = vld [vmem:[#allocation6 + $0xd0] sm:$0xff]
    %v128 = vld [vmem:[#allocation6 + $0xd8] sm:$0xff]
    %v129 = vld [vmem:[#allocation6 + $0xe0] sm:$0xff]
    %v130 = vld [vmem:[#allocation6 + $0xe8] sm:$0xff]
    %v131 = vld [vmem:[#allocation6 + $0xf0] sm:$0xff]
    %v132 = vld [vmem:[#allocation6 + $0xf8] sm:$0xff]
    %v133 = vld [vmem:[#allocation6 + $0x100] sm:$0xff]
    %v134 = vld [vmem:[#allocation6 + $0x108] sm:$0xff]
    %v135 = vld [vmem:[#allocation6 + $0x110] sm:$0xff]
    %v136 = vld [vmem:[#allocation6 + $0x118] sm:$0xff]
    %v137 = vld [vmem:[#allocation6 + $0x120] sm:$0xff]
    %v138 = vld [vmem:[#allocation6 + $0x128] sm:$0xff]
    %v139 = vld [vmem:[#allocation6 + $0x130] sm:$0xff]
    %v140 = vld [vmem:[#allocation6 + $0x138] sm:$0xff]
    %v141 = vld [vmem:[#allocation6 + $0x140] sm:$0xff]
    %v142 = vld [vmem:[#allocation6 + $0x148] sm:$0xff]
    %v143 = vld [vmem:[#allocation6 + $0x150] sm:$0xff]
    %v144 = vld [vmem:[#allocation6 + $0x158] sm:$0xff]
    %v145 = vld [vmem:[#allocation6 + $0x160] sm:$0xff]
    %v146 = vld [vmem:[#allocation6 + $0x168] sm:$0xff]
    %v147 = vld [vmem:[#allocation6 + $0x170] sm:$0xff]
    %v148 = vld [vmem:[#allocation6 + $0x178] sm:$0xff]
    %v149 = vld [vmem:[%s3] sm:$0x7]
    %v151 = vperm.slane %v149, 0
    %v152 = vperm.slane %v149, 1
    %v153 = vperm.slane %v149, 2
    %157 = vmatpush.msra.mxu0 %v146
    %158 = vmatpush.msra.mxu0 %v143
    %159 = vmatpush.msra.mxu0 %v140
    %160 = vmatpush.msra.mxu0 %v137
    %161 = vmatpush.msra.mxu0 %v134
    %162 = vmatpush.msra.mxu0 %v131
    %163 = vmatpush.msra.mxu0 %v128
    %164 = vmatpush.msra.mxu0 %v125
    %165 = vmatpush.msra.mxu0 %v122
    %166 = vmatpush.msra.mxu0 %v119
    %167 = vmatpush.msra.mxu0 %v116
    %168 = vmatpush.msra.mxu0 %v113
    %169 = vmatpush.msra.mxu0 %v110
    %170 = vmatpush.msra.mxu0 %v107
    %171 = vmatpush.msra.mxu0 %v104
    %172 = vmatpush.msra.mxu0 %v101
    %173 = vmatmul.f32.gmra.mxu0 %v93
    %v174 = vpop.f32.mrf.mxu0
    %v175 = vadd.f32 %v151, %v174
    %176 = vmatmul.f32.gmra.mxu0 %v94
    %v177 = vpop.f32.mrf.mxu0
    %v178 = vadd.f32 %v151, %v177
    %179 = vmatmul.f32.gmra.mxu0 %v95
    %v180 = vpop.f32.mrf.mxu0
    %v181 = vadd.f32 %v151, %v180
    %182 = vmatmul.f32.gmra.mxu0 %v96
    %v183 = vpop.f32.mrf.mxu0
    %v184 = vadd.f32 %v151, %v183
    %185 = vmatmul.f32.gmra.mxu0 %v97
    %v186 = vpop.f32.mrf.mxu0
    %v187 = vadd.f32 %v151, %v186
    %188 = vmatmul.f32.gmra.mxu0 %v98
    %v189 = vpop.f32.mrf.mxu0
    %v190 = vadd.f32 %v151, %v189
    %191 = vmatmul.f32.gmra.mxu0 %v99
    %v192 = vpop.f32.mrf.mxu0
    %v193 = vadd.f32 %v151, %v192
    %194 = vmatmul.f32.gmra.mxu0 %v100
    %v195 = vpop.f32.mrf.mxu0
    %v196 = vadd.f32 %v151, %v195
    %197 = vdwg.mxu0
    %198 = vmatpush.msra.mxu0 %v147
    %199 = vmatpush.msra.mxu0 %v144
    %200 = vmatpush.msra.mxu0 %v141
    %201 = vmatpush.msra.mxu0 %v138
    %202 = vmatpush.msra.mxu0 %v135
    %203 = vmatpush.msra.mxu0 %v132
    %204 = vmatpush.msra.mxu0 %v129
    %205 = vmatpush.msra.mxu0 %v126
    %206 = vmatpush.msra.mxu0 %v123
    %207 = vmatpush.msra.mxu0 %v120
    %208 = vmatpush.msra.mxu0 %v117
    %209 = vmatpush.msra.mxu0 %v114
    %210 = vmatpush.msra.mxu0 %v111
    %211 = vmatpush.msra.mxu0 %v108
    %212 = vmatpush.msra.mxu0 %v105
    %213 = vmatpush.msra.mxu0 %v102
    %214 = vmatmul.f32.gmra.mxu0 %v93
    %v215 = vpop.f32.mrf.mxu0
    %v216 = vadd.f32 %v152, %v215
    %217 = vmatmul.f32.gmra.mxu0 %v94
    %v218 = vpop.f32.mrf.mxu0
    %v219 = vadd.f32 %v152, %v218
    %220 = vmatmul.f32.gmra.mxu0 %v95
    %v221 = vpop.f32.mrf.mxu0
    %v222 = vadd.f32 %v152, %v221
    %223 = vmatmul.f32.gmra.mxu0 %v96
    %v224 = vpop.f32.mrf.mxu0
    %v225 = vadd.f32 %v152, %v224
    %226 = vmatmul.f32.gmra.mxu0 %v97
    %v227 = vpop.f32.mrf.mxu0
    %v228 = vadd.f32 %v152, %v227
    %229 = vmatmul.f32.gmra.mxu0 %v98
    %v230 = vpop.f32.mrf.mxu0
    %v231 = vadd.f32 %v152, %v230
    %232 = vmatmul.f32.gmra.mxu0 %v99
    %v233 = vpop.f32.mrf.mxu0
    %v234 = vadd.f32 %v152, %v233
    %235 = vmatmul.f32.gmra.mxu0 %v100
    %v236 = vpop.f32.mrf.mxu0
    %v237 = vadd.f32 %v152, %v236
    %238 = vdwg.mxu0
    %239 = vmatpush.msra.mxu0 %v148
    %240 = vmatpush.msra.mxu0 %v145
    %241 = vmatpush.msra.mxu0 %v142
    %242 = vmatpush.msra.mxu0 %v139
    %243 = vmatpush.msra.mxu0 %v136
    %244 = vmatpush.msra.mxu0 %v133
    %245 = vmatpush.msra.mxu0 %v130
    %246 = vmatpush.msra.mxu0 %v127
    %247 = vmatpush.msra.mxu0 %v124
    %248 = vmatpush.msra.mxu0 %v121
    %249 = vmatpush.msra.mxu0 %v118
    %250 = vmatpush.msra.mxu0 %v115
    %251 = vmatpush.msra.mxu0 %v112
    %252 = vmatpush.msra.mxu0 %v109
    %253 = vmatpush.msra.mxu0 %v106
    %254 = vmatpush.msra.mxu0 %v103
    %255 = vmatmul.f32.gmra.mxu0 %v93
    %v256 = vpop.f32.mrf.mxu0
    %v257 = vadd.f32 %v153, %v256
    %258 = vmatmul.f32.gmra.mxu0 %v94
    %v259 = vpop.f32.mrf.mxu0
    %v260 = vadd.f32 %v153, %v259
    %261 = vmatmul.f32.gmra.mxu0 %v95
    %v262 = vpop.f32.mrf.mxu0
    %v263 = vadd.f32 %v153, %v262
    %264 = vmatmul.f32.gmra.mxu0 %v96
    %v265 = vpop.f32.mrf.mxu0
    %v266 = vadd.f32 %v153, %v265
    %267 = vmatmul.f32.gmra.mxu0 %v97
    %v268 = vpop.f32.mrf.mxu0
    %v269 = vadd.f32 %v153, %v268
    %270 = vmatmul.f32.gmra.mxu0 %v98
    %v271 = vpop.f32.mrf.mxu0
    %v272 = vadd.f32 %v153, %v271
    %273 = vmatmul.f32.gmra.mxu0 %v99
    %v274 = vpop.f32.mrf.mxu0
    %v275 = vadd.f32 %v153, %v274
    %276 = vmatmul.f32.gmra.mxu0 %v100
    %v277 = vpop.f32.mrf.mxu0
    %v278 = vadd.f32 %v153, %v277
    %279 = vdwg.mxu0
    %280 = vst [vmem:[#allocation2] sm:$0xff] %v175
    %281 = vst [vmem:[#allocation2 + $0x8] sm:$0xff] %v216
    %282 = vst [vmem:[#allocation2 + $0x10] sm:$0xff] %v257
    %283 = vst [vmem:[#allocation2 + $0x18] sm:$0xff] %v178
    %284 = vst [vmem:[#allocation2 + $0x20] sm:$0xff] %v219
    %285 = vst [vmem:[#allocation2 + $0x28] sm:$0xff] %v260
    %286 = vst [vmem:[#allocation2 + $0x30] sm:$0xff] %v181
    %287 = vst [vmem:[#allocation2 + $0x38] sm:$0xff] %v222
    %288 = vst [vmem:[#allocation2 + $0x40] sm:$0xff] %v263
    %289 = vst [vmem:[#allocation2 + $0x48] sm:$0xff] %v184
    %290 = vst [vmem:[#allocation2 + $0x50] sm:$0xff] %v225
    %291 = vst [vmem:[#allocation2 + $0x58] sm:$0xff] %v266
    %292 = vst [vmem:[#allocation2 + $0x60] sm:$0xff] %v187
    %293 = vst [vmem:[#allocation2 + $0x68] sm:$0xff] %v228
    %294 = vst [vmem:[#allocation2 + $0x70] sm:$0xff] %v269
    %295 = vst [vmem:[#allocation2 + $0x78] sm:$0xff] %v190
    %296 = vst [vmem:[#allocation2 + $0x80] sm:$0xff] %v231
    %297 = vst [vmem:[#allocation2 + $0x88] sm:$0xff] %v272
    %298 = vst [vmem:[#allocation2 + $0x90] sm:$0xff] %v193
    %299 = vst [vmem:[#allocation2 + $0x98] sm:$0xff] %v234
    %300 = vst [vmem:[#allocation2 + $0xa0] sm:$0xff] %v275
    %301 = vst [vmem:[#allocation2 + $0xa8] sm:$0xff] %v196
    %302 = vst [vmem:[#allocation2 + $0xb0] sm:$0xff] %v237
    %303 = vst [vmem:[#allocation2 + $0xb8] sm:$0xff] %v278
    %v304 = vld [vmem:[%s1] sm:$0xff]
    %v305 = vld [vmem:[%s5] sm:$0x1]
    %s306 = smul.u32 0, 3
    %s307 = smul.addr %s306, 8
    %s308 = scalar_lea.vmem [#allocation2], %s307
    %v309 = vld [vmem:[%s308] sm:$0xff]
    %v310 = vld [vmem:[%s308 + $0x8] sm:$0xff]
    %v311 = vld [vmem:[%s308 + $0x10] sm:$0xff]
    %v312 = vld [vmem:[#allocation8] sm:$0xff]
    %v313 = vld [vmem:[#allocation8 + $0x8] sm:$0xff]
    %v314 = vld [vmem:[#allocation8 + $0x10] sm:$0xff]
    %v315 = vld [vmem:[#allocation8 + $0x18] sm:$0xff]
    %v316 = vld [vmem:[#allocation8 + $0x20] sm:$0xff]
    %v317 = vld [vmem:[#allocation8 + $0x28] sm:$0xff]
    %v318 = vld [vmem:[#allocation8 + $0x30] sm:$0xff]
    %v319 = vld [vmem:[#allocation8 + $0x38] sm:$0xff]
    %v320 = vld [vmem:[#allocation8 + $0x40] sm:$0xff]
    %v321 = vld [vmem:[#allocation8 + $0x48] sm:$0xff]
    %v322 = vld [vmem:[#allocation8 + $0x50] sm:$0xff]
    %v323 = vld [vmem:[#allocation8 + $0x58] sm:$0xff]
    %v324 = vld [vmem:[#allocation8 + $0x60] sm:$0xff]
    %v325 = vld [vmem:[#allocation8 + $0x68] sm:$0xff]
    %v326 = vld [vmem:[#allocation8 + $0x70] sm:$0xff]
    %v327 = vld [vmem:[#allocation8 + $0x78] sm:$0xff]
    %v328 = vld [vmem:[#allocation8 + $0x80] sm:$0xff]
    %v329 = vld [vmem:[#allocation8 + $0x88] sm:$0xff]
    %v330 = vld [vmem:[#allocation8 + $0x90] sm:$0xff]
    %v331 = vld [vmem:[#allocation8 + $0x98] sm:$0xff]
    %v332 = vld [vmem:[#allocation8 + $0xa0] sm:$0xff]
    %v333 = vld [vmem:[#allocation8 + $0xa8] sm:$0xff]
    %v334 = vld [vmem:[#allocation8 + $0xb0] sm:$0xff]
    %v335 = vld [vmem:[#allocation8 + $0xb8] sm:$0xff]
    %v336 = vld [vmem:[#allocation8 + $0xc0] sm:$0xff]
    %v337 = vld [vmem:[#allocation8 + $0xc8] sm:$0xff]
    %v338 = vld [vmem:[#allocation8 + $0xd0] sm:$0xff]
    %v339 = vld [vmem:[#allocation8 + $0xd8] sm:$0xff]
    %v340 = vld [vmem:[#allocation8 + $0xe0] sm:$0xff]
    %v341 = vld [vmem:[#allocation8 + $0xe8] sm:$0xff]
    %v342 = vld [vmem:[#allocation8 + $0xf0] sm:$0xff]
    %v343 = vld [vmem:[#allocation8 + $0xf8] sm:$0xff]
    %v344 = vld [vmem:[#allocation8 + $0x100] sm:$0xff]
    %v345 = vld [vmem:[#allocation8 + $0x108] sm:$0xff]
    %v346 = vld [vmem:[#allocation8 + $0x110] sm:$0xff]
    %v347 = vld [vmem:[#allocation8 + $0x118] sm:$0xff]
    %v348 = vld [vmem:[#allocation8 + $0x120] sm:$0xff]
    %v349 = vld [vmem:[#allocation8 + $0x128] sm:$0xff]
    %v350 = vld [vmem:[#allocation8 + $0x130] sm:$0xff]
    %v351 = vld [vmem:[#allocation8 + $0x138] sm:$0xff]
    %v352 = vld [vmem:[#allocation8 + $0x140] sm:$0xff]
    %v353 = vld [vmem:[#allocation8 + $0x148] sm:$0xff]
    %v354 = vld [vmem:[#allocation8 + $0x150] sm:$0xff]
    %v355 = vld [vmem:[#allocation8 + $0x158] sm:$0xff]
    %v356 = vld [vmem:[#allocation8 + $0x160] sm:$0xff]
    %v357 = vld [vmem:[#allocation8 + $0x168] sm:$0xff]
    %v358 = vld [vmem:[#allocation8 + $0x170] sm:$0xff]
    %v359 = vld [vmem:[#allocation8 + $0x178] sm:$0xff]
    %360 = vmatpush.msra.mxu0 %v357
    %361 = vmatpush.msra.mxu0 %v354
    %362 = vmatpush.msra.mxu0 %v351
    %363 = vmatpush.msra.mxu0 %v348
    %364 = vmatpush.msra.mxu0 %v345
    %365 = vmatpush.msra.mxu0 %v342
    %366 = vmatpush.msra.mxu0 %v339
    %367 = vmatpush.msra.mxu0 %v336
    %368 = vmatpush.msra.mxu0 %v333
    %369 = vmatpush.msra.mxu0 %v330
    %370 = vmatpush.msra.mxu0 %v327
    %371 = vmatpush.msra.mxu0 %v324
    %372 = vmatpush.msra.mxu0 %v321
    %373 = vmatpush.msra.mxu0 %v318
    %374 = vmatpush.msra.mxu0 %v315
    %375 = vmatpush.msra.mxu0 %v312
    %376 = vmatmul.f32.gmra.mxu0 0.0
    %v377 = vpop.f32.mrf.mxu0
    %v378 = vadd.f32 0.0, %v377
    %379 = vdwg.mxu0
    %380 = vmatpush.msra.mxu0 %v358
    %381 = vmatpush.msra.mxu0 %v355
    %382 = vmatpush.msra.mxu0 %v352
    %383 = vmatpush.msra.mxu0 %v349
    %384 = vmatpush.msra.mxu0 %v346
    %385 = vmatpush.msra.mxu0 %v343
    %386 = vmatpush.msra.mxu0 %v340
    %387 = vmatpush.msra.mxu0 %v337
    %388 = vmatpush.msra.mxu0 %v334
    %389 = vmatpush.msra.mxu0 %v331
    %390 = vmatpush.msra.mxu0 %v328
    %391 = vmatpush.msra.mxu0 %v325
    %392 = vmatpush.msra.mxu0 %v322
    %393 = vmatpush.msra.mxu0 %v319
    %394 = vmatpush.msra.mxu0 %v316
    %395 = vmatpush.msra.mxu0 %v313
    %396 = vmatmul.f32.gmra.mxu0 0.0
    %v397 = vpop.f32.mrf.mxu0
    %v398 = vadd.f32 0.0, %v397
    %399 = vdwg.mxu0
    %400 = vmatpush.msra.mxu0 %v359
    %401 = vmatpush.msra.mxu0 %v356
    %402 = vmatpush.msra.mxu0 %v353
    %403 = vmatpush.msra.mxu0 %v350
    %404 = vmatpush.msra.mxu0 %v347
    %405 = vmatpush.msra.mxu0 %v344
    %406 = vmatpush.msra.mxu0 %v341
    %407 = vmatpush.msra.mxu0 %v338
    %408 = vmatpush.msra.mxu0 %v335
    %409 = vmatpush.msra.mxu0 %v332
    %410 = vmatpush.msra.mxu0 %v329
    %411 = vmatpush.msra.mxu0 %v326
    %412 = vmatpush.msra.mxu0 %v323
    %413 = vmatpush.msra.mxu0 %v320
    %414 = vmatpush.msra.mxu0 %v317
    %415 = vmatpush.msra.mxu0 %v314
    %416 = vmatmul.f32.gmra.mxu0 0.0
    %v417 = vpop.f32.mrf.mxu0
    %v418 = vadd.f32 0.0, %v417
    %419 = vdwg.mxu0
    %v420 = vadd.f32 %v309, %v378
    %v421 = vxor.u32 %v420, 2147483648
    %v422 = vmul.f32 %v421, 1.442695
    %v423 = vpow.pop %v422
    %v424 = vadd.f32 %v423, 1.0
    %v425 = vrcp.pop %v424
    %v426 = vmul.f32 %v424, %v425
    %v427 = vsub.f32 1.0, %v426
    %v428 = vmul.f32 %v425, %v427
    %v429 = vadd.f32 %v425, %v428
    %vm430 = vweird.f32 %v424
    %vm431 = vweird.f32 %v425
    %vm432 = vmor %vm430, %vm431
    %v433 = vsel %vm432, %v425, %v429
    %v434 = vand.u32 2147483647, %v424
    %vm435 = vcmp.eq.f32.partialorder %v434, 8.507059e+37
    %v436 = vand.u32 %v424, 2147483648
    %v437 = vor.u32 1.1754944e-38, %v436
    %v438 = vsel %vm435, %v437, %v433
    %v439 = vmul.f32 1.0, %v438
    %v440 = vadd.f32 %v310, %v398
    %v441 = vxor.u32 %v440, 2147483648
    %v442 = vmul.f32 %v441, 1.442695
    %v443 = vpow.pop %v442
    %v444 = vadd.f32 %v443, 1.0
    %v445 = vrcp.pop %v444
    %v446 = vmul.f32 %v444, %v445
    %v447 = vsub.f32 1.0, %v446
    %v448 = vmul.f32 %v445, %v447
    %v449 = vadd.f32 %v445, %v448
    %vm450 = vweird.f32 %v444
    %vm451 = vweird.f32 %v445
    %vm452 = vmor %vm450, %vm451
    %v453 = vsel %vm452, %v445, %v449
    %v454 = vand.u32 2147483647, %v444
    %vm455 = vcmp.eq.f32.partialorder %v454, 8.507059e+37
    %v456 = vand.u32 %v444, 2147483648
    %v457 = vor.u32 1.1754944e-38, %v456
    %v458 = vsel %vm455, %v457, %v453
    %v459 = vmul.f32 1.0, %v458
    %v461 = vperm.slane %v305, 0
    %v463 = vadd.f32 %v418, %v461
    %v464 = vmul.f32 %v439, %v463
    %v465 = vadd.f32 %v311, %v464
    %v466 = vtanh.pop %v465
    %v467 = vsub.f32 1.0, %v459
    %v468 = vmul.f32 %v467, %v466
    %v469 = vmul.f32 %v459, 0.0
    %v470 = vadd.f32 %v468, %v469
    %vm471 = vcmp.gt.s32.totalorder %v304, 0
    %v472 = vsel %vm471, 1, 0
    %v473 = vcvt.s32.f32 %v472
    %475 = vset.pattern.permute.xlu0 0
    %476 = vperm.xlu0 %475, %v473
    %v477 = vpop.permute.xlu0 %476
    %v479 = vmul.f32 %v477, %v470
    %v480 = vadd.f32 %v479, 0.0
    %s481 = smul.u32 1, 3
    %s482 = smul.addr %s481, 8
    %s483 = scalar_lea.vmem [#allocation2], %s482
    %v484 = vld [vmem:[%s483] sm:$0xff]
    %v485 = vld [vmem:[%s483 + $0x8] sm:$0xff]
    %v486 = vld [vmem:[%s483 + $0x10] sm:$0xff]
    %487 = vmatpush.msra.mxu0 %v357
    %488 = vmatpush.msra.mxu0 %v354
    %489 = vmatpush.msra.mxu0 %v351
    %490 = vmatpush.msra.mxu0 %v348
    %491 = vmatpush.msra.mxu0 %v345
    %492 = vmatpush.msra.mxu0 %v342
    %493 = vmatpush.msra.mxu0 %v339
    %494 = vmatpush.msra.mxu0 %v336
    %495 = vmatpush.msra.mxu0 %v333
    %496 = vmatpush.msra.mxu0 %v330
    %497 = vmatpush.msra.mxu0 %v327
    %498 = vmatpush.msra.mxu0 %v324
    %499 = vmatpush.msra.mxu0 %v321
    %500 = vmatpush.msra.mxu0 %v318
    %501 = vmatpush.msra.mxu0 %v315
    %502 = vmatpush.msra.mxu0 %v312
    %503 = vmatmul.f32.gmra.mxu0 %v480
    %v504 = vpop.f32.mrf.mxu0
    %v505 = vadd.f32 0.0, %v504
    %506 = vdwg.mxu0
    %507 = vmatpush.msra.mxu0 %v358
    %508 = vmatpush.msra.mxu0 %v355
    %509 = vmatpush.msra.mxu0 %v352
    %510 = vmatpush.msra.mxu0 %v349
    %511 = vmatpush.msra.mxu0 %v346
    %512 = vmatpush.msra.mxu0 %v343
    %513 = vmatpush.msra.mxu0 %v340
    %514 = vmatpush.msra.mxu0 %v337
    %515 = vmatpush.msra.mxu0 %v334
    %516 = vmatpush.msra.mxu0 %v331
    %517 = vmatpush.msra.mxu0 %v328
    %518 = vmatpush.msra.mxu0 %v325
    %519 = vmatpush.msra.mxu0 %v322
    %520 = vmatpush.msra.mxu0 %v319
    %521 = vmatpush.msra.mxu0 %v316
    %522 = vmatpush.msra.mxu0 %v313
    %523 = vmatmul.f32.gmra.mxu0 %v480
    %v524 = vpop.f32.mrf.mxu0
    %v525 = vadd.f32 0.0, %v524
    %526 = vdwg.mxu0
    %527 = vmatpush.msra.mxu0 %v359
    %528 = vmatpush.msra.mxu0 %v356
    %529 = vmatpush.msra.mxu0 %v353
    %530 = vmatpush.msra.mxu0 %v350
    %531 = vmatpush.msra.mxu0 %v347
    %532 = vmatpush.msra.mxu0 %v344
    %533 = vmatpush.msra.mxu0 %v341
    %534 = vmatpush.msra.mxu0 %v338
    %535 = vmatpush.msra.mxu0 %v335
    %536 = vmatpush.msra.mxu0 %v332
    %537 = vmatpush.msra.mxu0 %v329
    %538 = vmatpush.msra.mxu0 %v326
    %539 = vmatpush.msra.mxu0 %v323
    %540 = vmatpush.msra.mxu0 %v320
    %541 = vmatpush.msra.mxu0 %v317
    %542 = vmatpush.msra.mxu0 %v314
    %543 = vmatmul.f32.gmra.mxu0 %v480
    %v544 = vpop.f32.mrf.mxu0
    %v545 = vadd.f32 0.0, %v544
    %546 = vdwg.mxu0
    %v547 = vadd.f32 %v484, %v505
    %v548 = vxor.u32 %v547, 2147483648
    %v549 = vmul.f32 %v548, 1.442695
    %v550 = vpow.pop %v549
    %v551 = vadd.f32 %v550, 1.0
    %v552 = vrcp.pop %v551
    %v553 = vmul.f32 %v551, %v552
    %v554 = vsub.f32 1.0, %v553
    %v555 = vmul.f32 %v552, %v554
    %v556 = vadd.f32 %v552, %v555
    %vm557 = vweird.f32 %v551
    %vm558 = vweird.f32 %v552
    %vm559 = vmor %vm557, %vm558
    %v560 = vsel %vm559, %v552, %v556
    %v561 = vand.u32 2147483647, %v551
    %vm562 = vcmp.eq.f32.partialorder %v561, 8.507059e+37
    %v563 = vand.u32 %v551, 2147483648
    %v564 = vor.u32 1.1754944e-38, %v563
    %v565 = vsel %vm562, %v564, %v560
    %v566 = vmul.f32 1.0, %v565
    %v567 = vadd.f32 %v485, %v525
    %v568 = vxor.u32 %v567, 2147483648
    %v569 = vmul.f32 %v568, 1.442695
    %v570 = vpow.pop %v569
    %v571 = vadd.f32 %v570, 1.0
    %v572 = vrcp.pop %v571
    %v573 = vmul.f32 %v571, %v572
    %v574 = vsub.f32 1.0, %v573
    %v575 = vmul.f32 %v572, %v574
    %v576 = vadd.f32 %v572, %v575
    %vm577 = vweird.f32 %v571
    %vm578 = vweird.f32 %v572
    %vm579 = vmor %vm577, %vm578
    %v580 = vsel %vm579, %v572, %v576
    %v581 = vand.u32 2147483647, %v571
    %vm582 = vcmp.eq.f32.partialorder %v581, 8.507059e+37
    %v583 = vand.u32 %v571, 2147483648
    %v584 = vor.u32 1.1754944e-38, %v583
    %v585 = vsel %vm582, %v584, %v580
    %v586 = vmul.f32 1.0, %v585
    %v587 = vadd.f32 %v545, %v461
    %v588 = vmul.f32 %v566, %v587
    %v589 = vadd.f32 %v486, %v588
    %v590 = vtanh.pop %v589
    %v591 = vsub.f32 1.0, %v586
    %v592 = vmul.f32 %v591, %v590
    %v593 = vmul.f32 %v586, %v480
    %v594 = vadd.f32 %v592, %v593
    %vm595 = vcmp.gt.s32.totalorder %v304, 1
    %v596 = vsel %vm595, 1, 0
    %v597 = vcvt.s32.f32 %v596
    %v598 = vsub.f32 %v594, %v480
    %600 = vset.pattern.permute.xlu0 0
    %601 = vperm.xlu0 %600, %v597
    %v602 = vpop.permute.xlu0 %601
    %v604 = vmul.f32 %v602, %v598
    %v605 = vadd.f32 %v480, %v604
    %s606 = smul.u32 2, 3
    %s607 = smul.addr %s606, 8
    %s608 = scalar_lea.vmem [#allocation2], %s607
    %v609 = vld [vmem:[%s608] sm:$0xff]
    %v610 = vld [vmem:[%s608 + $0x8] sm:$0xff]
    %v611 = vld [vmem:[%s608 + $0x10] sm:$0xff]
    %612 = vmatpush.msra.mxu0 %v357
    %613 = vmatpush.msra.mxu0 %v354
    %614 = vmatpush.msra.mxu0 %v351
    %615 = vmatpush.msra.mxu0 %v348
    %616 = vmatpush.msra.mxu0 %v345
    %617 = vmatpush.msra.mxu0 %v342
    %618 = vmatpush.msra.mxu0 %v339
    %619 = vmatpush.msra.mxu0 %v336
    %620 = vmatpush.msra.mxu0 %v333
    %621 = vmatpush.msra.mxu0 %v330
    %622 = vmatpush.msra.mxu0 %v327
    %623 = vmatpush.msra.mxu0 %v324
    %624 = vmatpush.msra.mxu0 %v321
    %625 = vmatpush.msra.mxu0 %v318
    %626 = vmatpush.msra.mxu0 %v315
    %627 = vmatpush.msra.mxu0 %v312
    %628 = vmatmul.f32.gmra.mxu0 %v605
    %v629 = vpop.f32.mrf.mxu0
    %v630 = vadd.f32 0.0, %v629
    %631 = vdwg.mxu0
    %632 = vmatpush.msra.mxu0 %v358
    %633 = vmatpush.msra.mxu0 %v355
    %634 = vmatpush.msra.mxu0 %v352
    %635 = vmatpush.msra.mxu0 %v349
    %636 = vmatpush.msra.mxu0 %v346
    %637 = vmatpush.msra.mxu0 %v343
    %638 = vmatpush.msra.mxu0 %v340
    %639 = vmatpush.msra.mxu0 %v337
    %640 = vmatpush.msra.mxu0 %v334
    %641 = vmatpush.msra.mxu0 %v331
    %642 = vmatpush.msra.mxu0 %v328
    %643 = vmatpush.msra.mxu0 %v325
    %644 = vmatpush.msra.mxu0 %v322
    %645 = vmatpush.msra.mxu0 %v319
    %646 = vmatpush.msra.mxu0 %v316
    %647 = vmatpush.msra.mxu0 %v313
    %648 = vmatmul.f32.gmra.mxu0 %v605
    %v649 = vpop.f32.mrf.mxu0
    %v650 = vadd.f32 0.0, %v649
    %651 = vdwg.mxu0
    %652 = vmatpush.msra.mxu0 %v359
    %653 = vmatpush.msra.mxu0 %v356
    %654 = vmatpush.msra.mxu0 %v353
    %655 = vmatpush.msra.mxu0 %v350
    %656 = vmatpush.msra.mxu0 %v347
    %657 = vmatpush.msra.mxu0 %v344
    %658 = vmatpush.msra.mxu0 %v341
    %659 = vmatpush.msra.mxu0 %v338
    %660 = vmatpush.msra.mxu0 %v335
    %661 = vmatpush.msra.mxu0 %v332
    %662 = vmatpush.msra.mxu0 %v329
    %663 = vmatpush.msra.mxu0 %v326
    %664 = vmatpush.msra.mxu0 %v323
    %665 = vmatpush.msra.mxu0 %v320
    %666 = vmatpush.msra.mxu0 %v317
    %667 = vmatpush.msra.mxu0 %v314
    %668 = vmatmul.f32.gmra.mxu0 %v605
    %v669 = vpop.f32.mrf.mxu0
    %v670 = vadd.f32 0.0, %v669
    %671 = vdwg.mxu0
    %v672 = vadd.f32 %v609, %v630
    %v673 = vxor.u32 %v672, 2147483648
    %v674 = vmul.f32 %v673, 1.442695
    %v675 = vpow.pop %v674
    %v676 = vadd.f32 %v675, 1.0
    %v677 = vrcp.pop %v676
    %v678 = vmul.f32 %v676, %v677
    %v679 = vsub.f32 1.0, %v678
    %v680 = vmul.f32 %v677, %v679
    %v681 = vadd.f32 %v677, %v680
    %vm682 = vweird.f32 %v676
    %vm683 = vweird.f32 %v677
    %vm684 = vmor %vm682, %vm683
    %v685 = vsel %vm684, %v677, %v681
    %v686 = vand.u32 2147483647, %v676
    %vm687 = vcmp.eq.f32.partialorder %v686, 8.507059e+37
    %v688 = vand.u32 %v676, 2147483648
    %v689 = vor.u32 1.1754944e-38, %v688
    %v690 = vsel %vm687, %v689, %v685
    %v691 = vmul.f32 1.0, %v690
    %v692 = vadd.f32 %v610, %v650
    %v693 = vxor.u32 %v692, 2147483648
    %v694 = vmul.f32 %v693, 1.442695
    %v695 = vpow.pop %v694
    %v696 = vadd.f32 %v695, 1.0
    %v697 = vrcp.pop %v696
    %v698 = vmul.f32 %v696, %v697
    %v699 = vsub.f32 1.0, %v698
    %v700 = vmul.f32 %v697, %v699
    %v701 = vadd.f32 %v697, %v700
    %vm702 = vweird.f32 %v696
    %vm703 = vweird.f32 %v697
    %vm704 = vmor %vm702, %vm703
    %v705 = vsel %vm704, %v697, %v701
    %v706 = vand.u32 2147483647, %v696
    %vm707 = vcmp.eq.f32.partialorder %v706, 8.507059e+37
    %v708 = vand.u32 %v696, 2147483648
    %v709 = vor.u32 1.1754944e-38, %v708
    %v710 = vsel %vm707, %v709, %v705
    %v711 = vmul.f32 1.0, %v710
    %v712 = vadd.f32 %v670, %v461
    %v713 = vmul.f32 %v691, %v712
    %v714 = vadd.f32 %v611, %v713
    %v715 = vtanh.pop %v714
    %v716 = vsub.f32 1.0, %v711
    %v717 = vmul.f32 %v716, %v715
    %v718 = vmul.f32 %v711, %v605
    %v719 = vadd.f32 %v717, %v718
    %vm720 = vcmp.gt.s32.totalorder %v304, 2
    %v721 = vsel %vm720, 1, 0
    %v722 = vcvt.s32.f32 %v721
    %v723 = vsub.f32 %v719, %v605
    %725 = vset.pattern.permute.xlu0 0
    %726 = vperm.xlu0 %725, %v722
    %v727 = vpop.permute.xlu0 %726
    %v729 = vmul.f32 %v727, %v723
    %v730 = vadd.f32 %v605, %v729
    %s731 = smul.u32 3, 3
    %s732 = smul.addr %s731, 8
    %s733 = scalar_lea.vmem [#allocation2], %s732
    %v734 = vld [vmem:[%s733] sm:$0xff]
    %v735 = vld [vmem:[%s733 + $0x8] sm:$0xff]
    %v736 = vld [vmem:[%s733 + $0x10] sm:$0xff]
    %737 = vmatpush.msra.mxu0 %v357
    %738 = vmatpush.msra.mxu0 %v354
    %739 = vmatpush.msra.mxu0 %v351
    %740 = vmatpush.msra.mxu0 %v348
    %741 = vmatpush.msra.mxu0 %v345
    %742 = vmatpush.msra.mxu0 %v342
    %743 = vmatpush.msra.mxu0 %v339
    %744 = vmatpush.msra.mxu0 %v336
    %745 = vmatpush.msra.mxu0 %v333
    %746 = vmatpush.msra.mxu0 %v330
    %747 = vmatpush.msra.mxu0 %v327
    %748 = vmatpush.msra.mxu0 %v324
    %749 = vmatpush.msra.mxu0 %v321
    %750 = vmatpush.msra.mxu0 %v318
    %751 = vmatpush.msra.mxu0 %v315
    %752 = vmatpush.msra.mxu0 %v312
    %753 = vmatmul.f32.gmra.mxu0 %v730
    %v754 = vpop.f32.mrf.mxu0
    %v755 = vadd.f32 0.0, %v754
    %756 = vdwg.mxu0
    %757 = vmatpush.msra.mxu0 %v358
    %758 = vmatpush.msra.mxu0 %v355
    %759 = vmatpush.msra.mxu0 %v352
    %760 = vmatpush.msra.mxu0 %v349
    %761 = vmatpush.msra.mxu0 %v346
    %762 = vmatpush.msra.mxu0 %v343
    %763 = vmatpush.msra.mxu0 %v340
    %764 = vmatpush.msra.mxu0 %v337
    %765 = vmatpush.msra.mxu0 %v334
    %766 = vmatpush.msra.mxu0 %v331
    %767 = vmatpush.msra.mxu0 %v328
    %768 = vmatpush.msra.mxu0 %v325
    %769 = vmatpush.msra.mxu0 %v322
    %770 = vmatpush.msra.mxu0 %v319
    %771 = vmatpush.msra.mxu0 %v316
    %772 = vmatpush.msra.mxu0 %v313
    %773 = vmatmul.f32.gmra.mxu0 %v730
    %v774 = vpop.f32.mrf.mxu0
    %v775 = vadd.f32 0.0, %v774
    %776 = vdwg.mxu0
    %777 = vmatpush.msra.mxu0 %v359
    %778 = vmatpush.msra.mxu0 %v356
    %779 = vmatpush.msra.mxu0 %v353
    %780 = vmatpush.msra.mxu0 %v350
    %781 = vmatpush.msra.mxu0 %v347
    %782 = vmatpush.msra.mxu0 %v344
    %783 = vmatpush.msra.mxu0 %v341
    %784 = vmatpush.msra.mxu0 %v338
    %785 = vmatpush.msra.mxu0 %v335
    %786 = vmatpush.msra.mxu0 %v332
    %787 = vmatpush.msra.mxu0 %v329
    %788 = vmatpush.msra.mxu0 %v326
    %789 = vmatpush.msra.mxu0 %v323
    %790 = vmatpush.msra.mxu0 %v320
    %791 = vmatpush.msra.mxu0 %v317
    %792 = vmatpush.msra.mxu0 %v314
    %793 = vmatmul.f32.gmra.mxu0 %v730
    %v794 = vpop.f32.mrf.mxu0
    %v795 = vadd.f32 0.0, %v794
    %796 = vdwg.mxu0
    %v797 = vadd.f32 %v734, %v755
    %v798 = vxor.u32 %v797, 2147483648
    %v799 = vmul.f32 %v798, 1.442695
    %v800 = vpow.pop %v799
    %v801 = vadd.f32 %v800, 1.0
    %v802 = vrcp.pop %v801
    %v803 = vmul.f32 %v801, %v802
    %v804 = vsub.f32 1.0, %v803
    %v805 = vmul.f32 %v802, %v804
    %v806 = vadd.f32 %v802, %v805
    %vm807 = vweird.f32 %v801
    %vm808 = vweird.f32 %v802
    %vm809 = vmor %vm807, %vm808
    %v810 = vsel %vm809, %v802, %v806
    %v811 = vand.u32 2147483647, %v801
    %vm812 = vcmp.eq.f32.partialorder %v811, 8.507059e+37
    %v813 = vand.u32 %v801, 2147483648
    %v814 = vor.u32 1.1754944e-38, %v813
    %v815 = vsel %vm812, %v814, %v810
    %v816 = vmul.f32 1.0, %v815
    %v817 = vadd.f32 %v735, %v775
    %v818 = vxor.u32 %v817, 2147483648
    %v819 = vmul.f32 %v818, 1.442695
    %v820 = vpow.pop %v819
    %v821 = vadd.f32 %v820, 1.0
    %v822 = vrcp.pop %v821
    %v823 = vmul.f32 %v821, %v822
    %v824 = vsub.f32 1.0, %v823
    %v825 = vmul.f32 %v822, %v824
    %v826 = vadd.f32 %v822, %v825
    %vm827 = vweird.f32 %v821
    %vm828 = vweird.f32 %v822
    %vm829 = vmor %vm827, %vm828
    %v830 = vsel %vm829, %v822, %v826
    %v831 = vand.u32 2147483647, %v821
    %vm832 = vcmp.eq.f32.partialorder %v831, 8.507059e+37
    %v833 = vand.u32 %v821, 2147483648
    %v834 = vor.u32 1.1754944e-38, %v833
    %v835 = vsel %vm832, %v834, %v830
    %v836 = vmul.f32 1.0, %v835
    %v837 = vadd.f32 %v795, %v461
    %v838 = vmul.f32 %v816, %v837
    %v839 = vadd.f32 %v736, %v838
    %v840 = vtanh.pop %v839
    %v841 = vsub.f32 1.0, %v836
    %v842 = vmul.f32 %v841, %v840
    %v843 = vmul.f32 %v836, %v730
    %v844 = vadd.f32 %v842, %v843
    %vm845 = vcmp.gt.s32.totalorder %v304, 3
    %v846 = vsel %vm845, 1, 0
    %v847 = vcvt.s32.f32 %v846
    %v848 = vsub.f32 %v844, %v730
    %850 = vset.pattern.permute.xlu0 0
    %851 = vperm.xlu0 %850, %v847
    %v852 = vpop.permute.xlu0 %851
    %v854 = vmul.f32 %v852, %v848
    %v855 = vadd.f32 %v730, %v854
    %s856 = smul.u32 4, 3
    %s857 = smul.addr %s856, 8
    %s858 = scalar_lea.vmem [#allocation2], %s857
    %v859 = vld [vmem:[%s858] sm:$0xff]
    %v860 = vld [vmem:[%s858 + $0x8] sm:$0xff]
    %v861 = vld [vmem:[%s858 + $0x10] sm:$0xff]
    %862 = vmatpush.msra.mxu0 %v357
    %863 = vmatpush.msra.mxu0 %v354
    %864 = vmatpush.msra.mxu0 %v351
    %865 = vmatpush.msra.mxu0 %v348
    %866 = vmatpush.msra.mxu0 %v345
    %867 = vmatpush.msra.mxu0 %v342
    %868 = vmatpush.msra.mxu0 %v339
    %869 = vmatpush.msra.mxu0 %v336
    %870 = vmatpush.msra.mxu0 %v333
    %871 = vmatpush.msra.mxu0 %v330
    %872 = vmatpush.msra.mxu0 %v327
    %873 = vmatpush.msra.mxu0 %v324
    %874 = vmatpush.msra.mxu0 %v321
    %875 = vmatpush.msra.mxu0 %v318
    %876 = vmatpush.msra.mxu0 %v315
    %877 = vmatpush.msra.mxu0 %v312
    %878 = vmatmul.f32.gmra.mxu0 %v855
    %v879 = vpop.f32.mrf.mxu0
    %v880 = vadd.f32 0.0, %v879
    %881 = vdwg.mxu0
    %882 = vmatpush.msra.mxu0 %v358
    %883 = vmatpush.msra.mxu0 %v355
    %884 = vmatpush.msra.mxu0 %v352
    %885 = vmatpush.msra.mxu0 %v349
    %886 = vmatpush.msra.mxu0 %v346
    %887 = vmatpush.msra.mxu0 %v343
    %888 = vmatpush.msra.mxu0 %v340
    %889 = vmatpush.msra.mxu0 %v337
    %890 = vmatpush.msra.mxu0 %v334
    %891 = vmatpush.msra.mxu0 %v331
    %892 = vmatpush.msra.mxu0 %v328
    %893 = vmatpush.msra.mxu0 %v325
    %894 = vmatpush.msra.mxu0 %v322
    %895 = vmatpush.msra.mxu0 %v319
    %896 = vmatpush.msra.mxu0 %v316
    %897 = vmatpush.msra.mxu0 %v313
    %898 = vmatmul.f32.gmra.mxu0 %v855
    %v899 = vpop.f32.mrf.mxu0
    %v900 = vadd.f32 0.0, %v899
    %901 = vdwg.mxu0
    %902 = vmatpush.msra.mxu0 %v359
    %903 = vmatpush.msra.mxu0 %v356
    %904 = vmatpush.msra.mxu0 %v353
    %905 = vmatpush.msra.mxu0 %v350
    %906 = vmatpush.msra.mxu0 %v347
    %907 = vmatpush.msra.mxu0 %v344
    %908 = vmatpush.msra.mxu0 %v341
    %909 = vmatpush.msra.mxu0 %v338
    %910 = vmatpush.msra.mxu0 %v335
    %911 = vmatpush.msra.mxu0 %v332
    %912 = vmatpush.msra.mxu0 %v329
    %913 = vmatpush.msra.mxu0 %v326
    %914 = vmatpush.msra.mxu0 %v323
    %915 = vmatpush.msra.mxu0 %v320
    %916 = vmatpush.msra.mxu0 %v317
    %917 = vmatpush.msra.mxu0 %v314
    %918 = vmatmul.f32.gmra.mxu0 %v855
    %v919 = vpop.f32.mrf.mxu0
    %v920 = vadd.f32 0.0, %v919
    %921 = vdwg.mxu0
    %v922 = vadd.f32 %v859, %v880
    %v923 = vxor.u32 %v922, 2147483648
    %v924 = vmul.f32 %v923, 1.442695
    %v925 = vpow.pop %v924
    %v926 = vadd.f32 %v925, 1.0
    %v927 = vrcp.pop %v926
    %v928 = vmul.f32 %v926, %v927
    %v929 = vsub.f32 1.0, %v928
    %v930 = vmul.f32 %v927, %v929
    %v931 = vadd.f32 %v927, %v930
    %vm932 = vweird.f32 %v926
    %vm933 = vweird.f32 %v927
    %vm934 = vmor %vm932, %vm933
    %v935 = vsel %vm934, %v927, %v931
    %v936 = vand.u32 2147483647, %v926
    %vm937 = vcmp.eq.f32.partialorder %v936, 8.507059e+37
    %v938 = vand.u32 %v926, 2147483648
    %v939 = vor.u32 1.1754944e-38, %v938
    %v940 = vsel %vm937, %v939, %v935
    %v941 = vmul.f32 1.0, %v940
    %v942 = vadd.f32 %v860, %v900
    %v943 = vxor.u32 %v942, 2147483648
    %v944 = vmul.f32 %v943, 1.442695
    %v945 = vpow.pop %v944
    %v946 = vadd.f32 %v945, 1.0
    %v947 = vrcp.pop %v946
    %v948 = vmul.f32 %v946, %v947
    %v949 = vsub.f32 1.0, %v948
    %v950 = vmul.f32 %v947, %v949
    %v951 = vadd.f32 %v947, %v950
    %vm952 = vweird.f32 %v946
    %vm953 = vweird.f32 %v947
    %vm954 = vmor %vm952, %vm953
    %v955 = vsel %vm954, %v947, %v951
    %v956 = vand.u32 2147483647, %v946
    %vm957 = vcmp.eq.f32.partialorder %v956, 8.507059e+37
    %v958 = vand.u32 %v946, 2147483648
    %v959 = vor.u32 1.1754944e-38, %v958
    %v960 = vsel %vm957, %v959, %v955
    %v961 = vmul.f32 1.0, %v960
    %v962 = vadd.f32 %v920, %v461
    %v963 = vmul.f32 %v941, %v962
    %v964 = vadd.f32 %v861, %v963
    %v965 = vtanh.pop %v964
    %v966 = vsub.f32 1.0, %v961
    %v967 = vmul.f32 %v966, %v965
    %v968 = vmul.f32 %v961, %v855
    %v969 = vadd.f32 %v967, %v968
    %vm970 = vcmp.gt.s32.totalorder %v304, 4
    %v971 = vsel %vm970, 1, 0
    %v972 = vcvt.s32.f32 %v971
    %v973 = vsub.f32 %v969, %v855
    %975 = vset.pattern.permute.xlu0 0
    %976 = vperm.xlu0 %975, %v972
    %v977 = vpop.permute.xlu0 %976
    %v979 = vmul.f32 %v977, %v973
    %v980 = vadd.f32 %v855, %v979
    %s981 = smul.u32 5, 3
    %s982 = smul.addr %s981, 8
    %s983 = scalar_lea.vmem [#allocation2], %s982
    %v984 = vld [vmem:[%s983] sm:$0xff]
    %v985 = vld [vmem:[%s983 + $0x8] sm:$0xff]
    %v986 = vld [vmem:[%s983 + $0x10] sm:$0xff]
    %987 = vmatpush.msra.mxu0 %v357
    %988 = vmatpush.msra.mxu0 %v354
    %989 = vmatpush.msra.mxu0 %v351
    %990 = vmatpush.msra.mxu0 %v348
    %991 = vmatpush.msra.mxu0 %v345
    %992 = vmatpush.msra.mxu0 %v342
    %993 = vmatpush.msra.mxu0 %v339
    %994 = vmatpush.msra.mxu0 %v336
    %995 = vmatpush.msra.mxu0 %v333
    %996 = vmatpush.msra.mxu0 %v330
    %997 = vmatpush.msra.mxu0 %v327
    %998 = vmatpush.msra.mxu0 %v324
    %999 = vmatpush.msra.mxu0 %v321
    %1000 = vmatpush.msra.mxu0 %v318
    %1001 = vmatpush.msra.mxu0 %v315
    %1002 = vmatpush.msra.mxu0 %v312
    %1003 = vmatmul.f32.gmra.mxu0 %v980
    %v1004 = vpop.f32.mrf.mxu0
    %v1005 = vadd.f32 0.0, %v1004
    %1006 = vdwg.mxu0
    %1007 = vmatpush.msra.mxu0 %v358
    %1008 = vmatpush.msra.mxu0 %v355
    %1009 = vmatpush.msra.mxu0 %v352
    %1010 = vmatpush.msra.mxu0 %v349
    %1011 = vmatpush.msra.mxu0 %v346
    %1012 = vmatpush.msra.mxu0 %v343
    %1013 = vmatpush.msra.mxu0 %v340
    %1014 = vmatpush.msra.mxu0 %v337
    %1015 = vmatpush.msra.mxu0 %v334
    %1016 = vmatpush.msra.mxu0 %v331
    %1017 = vmatpush.msra.mxu0 %v328
    %1018 = vmatpush.msra.mxu0 %v325
    %1019 = vmatpush.msra.mxu0 %v322
    %1020 = vmatpush.msra.mxu0 %v319
    %1021 = vmatpush.msra.mxu0 %v316
    %1022 = vmatpush.msra.mxu0 %v313
    %1023 = vmatmul.f32.gmra.mxu0 %v980
    %v1024 = vpop.f32.mrf.mxu0
    %v1025 = vadd.f32 0.0, %v1024
    %1026 = vdwg.mxu0
    %1027 = vmatpush.msra.mxu0 %v359
    %1028 = vmatpush.msra.mxu0 %v356
    %1029 = vmatpush.msra.mxu0 %v353
    %1030 = vmatpush.msra.mxu0 %v350
    %1031 = vmatpush.msra.mxu0 %v347
    %1032 = vmatpush.msra.mxu0 %v344
    %1033 = vmatpush.msra.mxu0 %v341
    %1034 = vmatpush.msra.mxu0 %v338
    %1035 = vmatpush.msra.mxu0 %v335
    %1036 = vmatpush.msra.mxu0 %v332
    %1037 = vmatpush.msra.mxu0 %v329
    %1038 = vmatpush.msra.mxu0 %v326
    %1039 = vmatpush.msra.mxu0 %v323
    %1040 = vmatpush.msra.mxu0 %v320
    %1041 = vmatpush.msra.mxu0 %v317
    %1042 = vmatpush.msra.mxu0 %v314
    %1043 = vmatmul.f32.gmra.mxu0 %v980
    %v1044 = vpop.f32.mrf.mxu0
    %v1045 = vadd.f32 0.0, %v1044
    %1046 = vdwg.mxu0
    %v1047 = vadd.f32 %v984, %v1005
    %v1048 = vxor.u32 %v1047, 2147483648
    %v1049 = vmul.f32 %v1048, 1.442695
    %v1050 = vpow.pop %v1049
    %v1051 = vadd.f32 %v1050, 1.0
    %v1052 = vrcp.pop %v1051
    %v1053 = vmul.f32 %v1051, %v1052
    %v1054 = vsub.f32 1.0, %v1053
    %v1055 = vmul.f32 %v1052, %v1054
    %v1056 = vadd.f32 %v1052, %v1055
    %vm1057 = vweird.f32 %v1051
    %vm1058 = vweird.f32 %v1052
    %vm1059 = vmor %vm1057, %vm1058
    %v1060 = vsel %vm1059, %v1052, %v1056
    %v1061 = vand.u32 2147483647, %v1051
    %vm1062 = vcmp.eq.f32.partialorder %v1061, 8.507059e+37
    %v1063 = vand.u32 %v1051, 2147483648
    %v1064 = vor.u32 1.1754944e-38, %v1063
    %v1065 = vsel %vm1062, %v1064, %v1060
    %v1066 = vmul.f32 1.0, %v1065
    %v1067 = vadd.f32 %v985, %v1025
    %v1068 = vxor.u32 %v1067, 2147483648
    %v1069 = vmul.f32 %v1068, 1.442695
    %v1070 = vpow.pop %v1069
    %v1071 = vadd.f32 %v1070, 1.0
    %v1072 = vrcp.pop %v1071
    %v1073 = vmul.f32 %v1071, %v1072
    %v1074 = vsub.f32 1.0, %v1073
    %v1075 = vmul.f32 %v1072, %v1074
    %v1076 = vadd.f32 %v1072, %v1075
    %vm1077 = vweird.f32 %v1071
    %vm1078 = vweird.f32 %v1072
    %vm1079 = vmor %vm1077, %vm1078
    %v1080 = vsel %vm1079, %v1072, %v1076
    %v1081 = vand.u32 2147483647, %v1071
    %vm1082 = vcmp.eq.f32.partialorder %v1081, 8.507059e+37
    %v1083 = vand.u32 %v1071, 2147483648
    %v1084 = vor.u32 1.1754944e-38, %v1083
    %v1085 = vsel %vm1082, %v1084, %v1080
    %v1086 = vmul.f32 1.0, %v1085
    %v1087 = vadd.f32 %v1045, %v461
    %v1088 = vmul.f32 %v1066, %v1087
    %v1089 = vadd.f32 %v986, %v1088
    %v1090 = vtanh.pop %v1089
    %v1091 = vsub.f32 1.0, %v1086
    %v1092 = vmul.f32 %v1091, %v1090
    %v1093 = vmul.f32 %v1086, %v980
    %v1094 = vadd.f32 %v1092, %v1093
    %vm1095 = vcmp.gt.s32.totalorder %v304, 5
    %v1096 = vsel %vm1095, 1, 0
    %v1097 = vcvt.s32.f32 %v1096
    %v1098 = vsub.f32 %v1094, %v980
    %1100 = vset.pattern.permute.xlu0 0
    %1101 = vperm.xlu0 %1100, %v1097
    %v1102 = vpop.permute.xlu0 %1101
    %v1104 = vmul.f32 %v1102, %v1098
    %v1105 = vadd.f32 %v980, %v1104
    %s1106 = smul.u32 6, 3
    %s1107 = smul.addr %s1106, 8
    %s1108 = scalar_lea.vmem [#allocation2], %s1107
    %v1109 = vld [vmem:[%s1108] sm:$0xff]
    %v1110 = vld [vmem:[%s1108 + $0x8] sm:$0xff]
    %v1111 = vld [vmem:[%s1108 + $0x10] sm:$0xff]
    %1112 = vmatpush.msra.mxu0 %v357
    %1113 = vmatpush.msra.mxu0 %v354
    %1114 = vmatpush.msra.mxu0 %v351
    %1115 = vmatpush.msra.mxu0 %v348
    %1116 = vmatpush.msra.mxu0 %v345
    %1117 = vmatpush.msra.mxu0 %v342
    %1118 = vmatpush.msra.mxu0 %v339
    %1119 = vmatpush.msra.mxu0 %v336
    %1120 = vmatpush.msra.mxu0 %v333
    %1121 = vmatpush.msra.mxu0 %v330
    %1122 = vmatpush.msra.mxu0 %v327
    %1123 = vmatpush.msra.mxu0 %v324
    %1124 = vmatpush.msra.mxu0 %v321
    %1125 = vmatpush.msra.mxu0 %v318
    %1126 = vmatpush.msra.mxu0 %v315
    %1127 = vmatpush.msra.mxu0 %v312
    %1128 = vmatmul.f32.gmra.mxu0 %v1105
    %v1129 = vpop.f32.mrf.mxu0
    %v1130 = vadd.f32 0.0, %v1129
    %1131 = vdwg.mxu0
    %1132 = vmatpush.msra.mxu0 %v358
    %1133 = vmatpush.msra.mxu0 %v355
    %1134 = vmatpush.msra.mxu0 %v352
    %1135 = vmatpush.msra.mxu0 %v349
    %1136 = vmatpush.msra.mxu0 %v346
    %1137 = vmatpush.msra.mxu0 %v343
    %1138 = vmatpush.msra.mxu0 %v340
    %1139 = vmatpush.msra.mxu0 %v337
    %1140 = vmatpush.msra.mxu0 %v334
    %1141 = vmatpush.msra.mxu0 %v331
    %1142 = vmatpush.msra.mxu0 %v328
    %1143 = vmatpush.msra.mxu0 %v325
    %1144 = vmatpush.msra.mxu0 %v322
    %1145 = vmatpush.msra.mxu0 %v319
    %1146 = vmatpush.msra.mxu0 %v316
    %1147 = vmatpush.msra.mxu0 %v313
    %1148 = vmatmul.f32.gmra.mxu0 %v1105
    %v1149 = vpop.f32.mrf.mxu0
    %v1150 = vadd.f32 0.0, %v1149
    %1151 = vdwg.mxu0
    %1152 = vmatpush.msra.mxu0 %v359
    %1153 = vmatpush.msra.mxu0 %v356
    %1154 = vmatpush.msra.mxu0 %v353
    %1155 = vmatpush.msra.mxu0 %v350
    %1156 = vmatpush.msra.mxu0 %v347
    %1157 = vmatpush.msra.mxu0 %v344
    %1158 = vmatpush.msra.mxu0 %v341
    %1159 = vmatpush.msra.mxu0 %v338
    %1160 = vmatpush.msra.mxu0 %v335
    %1161 = vmatpush.msra.mxu0 %v332
    %1162 = vmatpush.msra.mxu0 %v329
    %1163 = vmatpush.msra.mxu0 %v326
    %1164 = vmatpush.msra.mxu0 %v323
    %1165 = vmatpush.msra.mxu0 %v320
    %1166 = vmatpush.msra.mxu0 %v317
    %1167 = vmatpush.msra.mxu0 %v314
    %1168 = vmatmul.f32.gmra.mxu0 %v1105
    %v1169 = vpop.f32.mrf.mxu0
    %v1170 = vadd.f32 0.0, %v1169
    %1171 = vdwg.mxu0
    %v1172 = vadd.f32 %v1109, %v1130
    %v1173 = vxor.u32 %v1172, 2147483648
    %v1174 = vmul.f32 %v1173, 1.442695
    %v1175 = vpow.pop %v1174
    %v1176 = vadd.f32 %v1175, 1.0
    %v1177 = vrcp.pop %v1176
    %v1178 = vmul.f32 %v1176, %v1177
    %v1179 = vsub.f32 1.0, %v1178
    %v1180 = vmul.f32 %v1177, %v1179
    %v1181 = vadd.f32 %v1177, %v1180
    %vm1182 = vweird.f32 %v1176
    %vm1183 = vweird.f32 %v1177
    %vm1184 = vmor %vm1182, %vm1183
    %v1185 = vsel %vm1184, %v1177, %v1181
    %v1186 = vand.u32 2147483647, %v1176
    %vm1187 = vcmp.eq.f32.partialorder %v1186, 8.507059e+37
    %v1188 = vand.u32 %v1176, 2147483648
    %v1189 = vor.u32 1.1754944e-38, %v1188
    %v1190 = vsel %vm1187, %v1189, %v1185
    %v1191 = vmul.f32 1.0, %v1190
    %v1192 = vadd.f32 %v1110, %v1150
    %v1193 = vxor.u32 %v1192, 2147483648
    %v1194 = vmul.f32 %v1193, 1.442695
    %v1195 = vpow.pop %v1194
    %v1196 = vadd.f32 %v1195, 1.0
    %v1197 = vrcp.pop %v1196
    %v1198 = vmul.f32 %v1196, %v1197
    %v1199 = vsub.f32 1.0, %v1198
    %v1200 = vmul.f32 %v1197, %v1199
    %v1201 = vadd.f32 %v1197, %v1200
    %vm1202 = vweird.f32 %v1196
    %vm1203 = vweird.f32 %v1197
    %vm1204 = vmor %vm1202, %vm1203
    %v1205 = vsel %vm1204, %v1197, %v1201
    %v1206 = vand.u32 2147483647, %v1196
    %vm1207 = vcmp.eq.f32.partialorder %v1206, 8.507059e+37
    %v1208 = vand.u32 %v1196, 2147483648
    %v1209 = vor.u32 1.1754944e-38, %v1208
    %v1210 = vsel %vm1207, %v1209, %v1205
    %v1211 = vmul.f32 1.0, %v1210
    %v1212 = vadd.f32 %v1170, %v461
    %v1213 = vmul.f32 %v1191, %v1212
    %v1214 = vadd.f32 %v1111, %v1213
    %v1215 = vtanh.pop %v1214
    %v1216 = vsub.f32 1.0, %v1211
    %v1217 = vmul.f32 %v1216, %v1215
    %v1218 = vmul.f32 %v1211, %v1105
    %v1219 = vadd.f32 %v1217, %v1218
    %vm1220 = vcmp.gt.s32.totalorder %v304, 6
    %v1221 = vsel %vm1220, 1, 0
    %v1222 = vcvt.s32.f32 %v1221
    %v1223 = vsub.f32 %v1219, %v1105
    %1225 = vset.pattern.permute.xlu0 0
    %1226 = vperm.xlu0 %1225, %v1222
    %v1227 = vpop.permute.xlu0 %1226
    %v1229 = vmul.f32 %v1227, %v1223
    %v1230 = vadd.f32 %v1105, %v1229
    %s1231 = smul.u32 7, 3
    %s1232 = smul.addr %s1231, 8
    %s1233 = scalar_lea.vmem [#allocation2], %s1232
    %v1234 = vld [vmem:[%s1233] sm:$0xff]
    %v1235 = vld [vmem:[%s1233 + $0x8] sm:$0xff]
    %v1236 = vld [vmem:[%s1233 + $0x10] sm:$0xff]
    %1237 = vmatpush.msra.mxu0 %v357
    %1238 = vmatpush.msra.mxu0 %v354
    %1239 = vmatpush.msra.mxu0 %v351
    %1240 = vmatpush.msra.mxu0 %v348
    %1241 = vmatpush.msra.mxu0 %v345
    %1242 = vmatpush.msra.mxu0 %v342
    %1243 = vmatpush.msra.mxu0 %v339
    %1244 = vmatpush.msra.mxu0 %v336
    %1245 = vmatpush.msra.mxu0 %v333
    %1246 = vmatpush.msra.mxu0 %v330
    %1247 = vmatpush.msra.mxu0 %v327
    %1248 = vmatpush.msra.mxu0 %v324
    %1249 = vmatpush.msra.mxu0 %v321
    %1250 = vmatpush.msra.mxu0 %v318
    %1251 = vmatpush.msra.mxu0 %v315
    %1252 = vmatpush.msra.mxu0 %v312
    %1253 = vmatmul.f32.gmra.mxu0 %v1230
    %v1254 = vpop.f32.mrf.mxu0
    %v1255 = vadd.f32 0.0, %v1254
    %1256 = vdwg.mxu0
    %1257 = vmatpush.msra.mxu0 %v358
    %1258 = vmatpush.msra.mxu0 %v355
    %1259 = vmatpush.msra.mxu0 %v352
    %1260 = vmatpush.msra.mxu0 %v349
    %1261 = vmatpush.msra.mxu0 %v346
    %1262 = vmatpush.msra.mxu0 %v343
    %1263 = vmatpush.msra.mxu0 %v340
    %1264 = vmatpush.msra.mxu0 %v337
    %1265 = vmatpush.msra.mxu0 %v334
    %1266 = vmatpush.msra.mxu0 %v331
    %1267 = vmatpush.msra.mxu0 %v328
    %1268 = vmatpush.msra.mxu0 %v325
    %1269 = vmatpush.msra.mxu0 %v322
    %1270 = vmatpush.msra.mxu0 %v319
    %1271 = vmatpush.msra.mxu0 %v316
    %1272 = vmatpush.msra.mxu0 %v313
    %1273 = vmatmul.f32.gmra.mxu0 %v1230
    %v1274 = vpop.f32.mrf.mxu0
    %v1275 = vadd.f32 0.0, %v1274
    %1276 = vdwg.mxu0
    %1277 = vmatpush.msra.mxu0 %v359
    %1278 = vmatpush.msra.mxu0 %v356
    %1279 = vmatpush.msra.mxu0 %v353
    %1280 = vmatpush.msra.mxu0 %v350
    %1281 = vmatpush.msra.mxu0 %v347
    %1282 = vmatpush.msra.mxu0 %v344
    %1283 = vmatpush.msra.mxu0 %v341
    %1284 = vmatpush.msra.mxu0 %v338
    %1285 = vmatpush.msra.mxu0 %v335
    %1286 = vmatpush.msra.mxu0 %v332
    %1287 = vmatpush.msra.mxu0 %v329
    %1288 = vmatpush.msra.mxu0 %v326
    %1289 = vmatpush.msra.mxu0 %v323
    %1290 = vmatpush.msra.mxu0 %v320
    %1291 = vmatpush.msra.mxu0 %v317
    %1292 = vmatpush.msra.mxu0 %v314
    %1293 = vmatmul.f32.gmra.mxu0 %v1230
    %v1294 = vpop.f32.mrf.mxu0
    %v1295 = vadd.f32 0.0, %v1294
    %1296 = vdwg.mxu0
    %v1297 = vadd.f32 %v1234, %v1255
    %v1298 = vxor.u32 %v1297, 2147483648
    %v1299 = vmul.f32 %v1298, 1.442695
    %v1300 = vpow.pop %v1299
    %v1301 = vadd.f32 %v1300, 1.0
    %v1302 = vrcp.pop %v1301
    %v1303 = vmul.f32 %v1301, %v1302
    %v1304 = vsub.f32 1.0, %v1303
    %v1305 = vmul.f32 %v1302, %v1304
    %v1306 = vadd.f32 %v1302, %v1305
    %vm1307 = vweird.f32 %v1301
    %vm1308 = vweird.f32 %v1302
    %vm1309 = vmor %vm1307, %vm1308
    %v1310 = vsel %vm1309, %v1302, %v1306
    %v1311 = vand.u32 2147483647, %v1301
    %vm1312 = vcmp.eq.f32.partialorder %v1311, 8.507059e+37
    %v1313 = vand.u32 %v1301, 2147483648
    %v1314 = vor.u32 1.1754944e-38, %v1313
    %v1315 = vsel %vm1312, %v1314, %v1310
    %v1316 = vmul.f32 1.0, %v1315
    %v1317 = vadd.f32 %v1235, %v1275
    %v1318 = vxor.u32 %v1317, 2147483648
    %v1319 = vmul.f32 %v1318, 1.442695
    %v1320 = vpow.pop %v1319
    %v1321 = vadd.f32 %v1320, 1.0
    %v1322 = vrcp.pop %v1321
    %v1323 = vmul.f32 %v1321, %v1322
    %v1324 = vsub.f32 1.0, %v1323
    %v1325 = vmul.f32 %v1322, %v1324
    %v1326 = vadd.f32 %v1322, %v1325
    %vm1327 = vweird.f32 %v1321
    %vm1328 = vweird.f32 %v1322
    %vm1329 = vmor %vm1327, %vm1328
    %v1330 = vsel %vm1329, %v1322, %v1326
    %v1331 = vand.u32 2147483647, %v1321
    %vm1332 = vcmp.eq.f32.partialorder %v1331, 8.507059e+37
    %v1333 = vand.u32 %v1321, 2147483648
    %v1334 = vor.u32 1.1754944e-38, %v1333
    %v1335 = vsel %vm1332, %v1334, %v1330
    %v1336 = vmul.f32 1.0, %v1335
    %v1337 = vadd.f32 %v1295, %v461
    %v1338 = vmul.f32 %v1316, %v1337
    %v1339 = vadd.f32 %v1236, %v1338
    %v1340 = vtanh.pop %v1339
    %v1341 = vsub.f32 1.0, %v1336
    %v1342 = vmul.f32 %v1341, %v1340
    %v1343 = vmul.f32 %v1336, %v1230
    %v1344 = vadd.f32 %v1342, %v1343
    %vm1345 = vcmp.gt.s32.totalorder %v304, 7
    %v1346 = vsel %vm1345, 1, 0
    %v1347 = vcvt.s32.f32 %v1346
    %v1348 = vsub.f32 %v1344, %v1230
    %1350 = vset.pattern.permute.xlu0 0
    %1351 = vperm.xlu0 %1350, %v1347
    %v1352 = vpop.permute.xlu0 %1351
    %v1354 = vmul.f32 %v1352, %v1348
    %v1355 = vadd.f32 %v1230, %v1354
    %v1356 = vld [vmem:[#allocation9] sm:$0xff]
    %v1357 = vld [vmem:[#allocation9 + $0x8] sm:$0xff]
    %v1358 = vld [vmem:[#allocation9 + $0x10] sm:$0xff]
    %v1359 = vld [vmem:[#allocation9 + $0x18] sm:$0xff]
    %v1360 = vld [vmem:[#allocation9 + $0x20] sm:$0xff]
    %v1361 = vld [vmem:[#allocation9 + $0x28] sm:$0xff]
    %v1362 = vld [vmem:[#allocation9 + $0x30] sm:$0xff]
    %v1363 = vld [vmem:[#allocation9 + $0x38] sm:$0xff]
    %v1364 = vld [vmem:[#allocation9 + $0x40] sm:$0xff]
    %v1365 = vld [vmem:[#allocation9 + $0x48] sm:$0xff]
    %v1366 = vld [vmem:[#allocation9 + $0x50] sm:$0xff]
    %v1367 = vld [vmem:[#allocation9 + $0x58] sm:$0xff]
    %v1368 = vld [vmem:[#allocation9 + $0x60] sm:$0xff]
    %v1369 = vld [vmem:[#allocation9 + $0x68] sm:$0xff]
    %v1370 = vld [vmem:[#allocation9 + $0x70] sm:$0xff]
    %v1371 = vld [vmem:[#allocation9 + $0x78] sm:$0xff]
    %v1372 = vld [vmem:[%s7] sm:$0x1]
    %v1374 = vperm.slane %v1372, 0
    %1376 = vmatpush.msra.mxu0 %v1371
    %1377 = vmatpush.msra.mxu0 %v1370
    %1378 = vmatpush.msra.mxu0 %v1369
    %1379 = vmatpush.msra.mxu0 %v1368
    %1380 = vmatpush.msra.mxu0 %v1367
    %1381 = vmatpush.msra.mxu0 %v1366
    %1382 = vmatpush.msra.mxu0 %v1365
    %1383 = vmatpush.msra.mxu0 %v1364
    %1384 = vmatpush.msra.mxu0 %v1363
    %1385 = vmatpush.msra.mxu0 %v1362
    %1386 = vmatpush.msra.mxu0 %v1361
    %1387 = vmatpush.msra.mxu0 %v1360
    %1388 = vmatpush.msra.mxu0 %v1359
    %1389 = vmatpush.msra.mxu0 %v1358
    %1390 = vmatpush.msra.mxu0 %v1357
    %1391 = vmatpush.msra.mxu0 %v1356
    %1392 = vmatmul.f32.gmra.mxu0 %v1355
    %v1393 = vpop.f32.mrf.mxu0
    %v1394 = vadd.f32 %v1374, %v1393
    %1395 = vdwg.mxu0
    %1396 = vst [vmem:[#allocation11] sm:$0xff] %v1394
    // Predicated region
    $region50: #{tpu_custom_call.1} parent=1 // pred_check
      _
    $region51: #{tpu_custom_call.1} parent=1 // pred_check_branch
      %1398 = sbr.rel (0) target = $region53
    $region52: #{tpu_custom_call.1} parent=1 // pred_region
      %1400 = vsyncadd [#allocation5], 0
      %s1402 = sshll.u32 [#allocation11], 4
      %s1403 = int_to_ptr.vmem [resolvable:$true] %s1402
      %s1404 = sshll.u32 %s8, 4
      %s1405 = int_to_ptr.hbm [resolvable:$true] %s1404
      %1407 = dma.vmem_to_hbm [thread:$0]  %s1403, 128, %s1405, [#allocation5]
    $region53: #{tpu_custom_call.1} parent=1 // pred_fallthru
      _
    // Predicated region
    $region54: #{tpu_custom_call.1} parent=1 // pred_check
      _
    $region55: #{tpu_custom_call.1} parent=1 // pred_check_branch
      %1409 = sbr.rel (0) target = $region57
    $region56: #{tpu_custom_call.1} parent=1 // pred_region
      %1411 = dma.done [#allocation5], 128
    $region57: #{tpu_custom_call.1} parent=1 // pred_fallthru
      _
    %1412 = vsyncpa [#allocation4], 1
    %1413 = vsyncpa [#allocation7], 1
    %1414 = vsyncpa [#allocation10], 1
    %1415 = vsyncpa [#allocation5], 1

</llo_original>
